<compile_context>
chip_gen: v5e
topology: v5e:2x2
jax: 0.10.0
libtpu: 0.0.40
codegen_flags: <defaults>
</compile_context>

<pallas_src>
import functools

import jax
import jax.numpy as jnp
from jax.experimental import pallas as pl
from jax.experimental.pallas import tpu as pltpu


def _conv_out(extent, stride):
    return (extent - 3) // stride + 1


def _collapse_rows(p):
    """(oh, ow, k) -> (oh*ow, k) via sublane concat (avoids a tiled-dim reshape)."""
    oh = p.shape[0]
    return jnp.concatenate([p[r] for r in range(oh)], axis=0)


def _rows_to_image(y, oh, ow):
    """(oh*ow, c) -> (oh, ow, c) via static slices + leading-dim stack."""
    c = y.shape[-1]
    rows = [jax.lax.slice(y, (r * ow, 0), ((r + 1) * ow, c)) for r in range(oh)]
    return jnp.stack(rows, axis=0)


def _conv3x3_s1_relu(x, w_flat, bias):
    """Stride-1 3x3 conv + bias + ReLU.

    x:      (h, w, cin) bf16 image-form activation.
    w_flat: (9*cin, cout) bf16, K ordered (di, dj) tap-major / channel-minor.
    bias:   (1, cout) f32.
    Returns (oh*ow, cout) f32 in spatial row-major order.
    """
    h, w, cin = x.shape
    oh, ow = h - 2, w - 2
    taps = []
    for di in range(3):
        for dj in range(3):
            taps.append(jax.lax.slice(x, (di, dj, 0), (di + oh, dj + ow, cin)))
    p = jnp.concatenate(taps, axis=-1)          # (oh, ow, 9*cin)
    p2 = _collapse_rows(p)                      # (oh*ow, 9*cin): big-M MXU operand
    y = jnp.dot(p2, w_flat, preferred_element_type=jnp.float32)
    return jnp.maximum(y + bias, 0.0)


def _conv3x3_s2_relu_from_planes(xp, w_flat, bias, oh, ow):
    """Stride-2 3x3 conv from a 2x2 parity de-interleaved input.

    xp: (4, ph, pw, cin) bf16; plane (2*row_par + col_par) holds pixels
        (2r + row_par, 2c + col_par), so every stride-2 tap read below is a
        plain contiguous slice.
    """
    cin = xp.shape[-1]
    taps = []
    for di in range(3):
        for dj in range(3):
            plane = xp[(di % 2) * 2 + (dj % 2)]          # (ph, pw, cin)
            taps.append(jax.lax.slice(plane, (di // 2, dj // 2, 0),
                                      (di // 2 + oh, dj // 2 + ow, cin)))
    p = jnp.concatenate(taps, axis=-1)                   # (oh, ow, 9*cin)
    p2 = _collapse_rows(p)
    y = jnp.dot(p2, w_flat, preferred_element_type=jnp.float32)
    return jnp.maximum(y + bias, 0.0)


def _encoder_kernel(planes_ref, w1, b1, w2, b2, w3, b3, w4, b4, out_ref, *, dims):
    (oh1, ow1), (oh2, ow2), (oh3, ow3), (oh4, ow4) = dims

    # Normalize once per pixel; single f32 -> bf16 cast for the MXU inputs.
    xp = (planes_ref[...].astype(jnp.float32) * (1.0 / 255.0) - 0.5
          ).astype(jnp.bfloat16)

    y = _conv3x3_s2_relu_from_planes(xp, w1[...], b1[...], oh1, ow1)
    x = _rows_to_image(y.astype(jnp.bfloat16), oh1, ow1)
    y = _conv3x3_s1_relu(x, w2[...], b2[...])
    x = _rows_to_image(y.astype(jnp.bfloat16), oh2, ow2)
    y = _conv3x3_s1_relu(x, w3[...], b3[...])
    x = _rows_to_image(y.astype(jnp.bfloat16), oh3, ow3)
    y = _conv3x3_s1_relu(x, w4[...], b4[...])            # (oh4*ow4, 32) f32

    # NCHW-flatten order, lane-dense store: (32, oh4*ow4).
    out_ref[...] = jnp.transpose(y)


def _encoder_pallas(obs_nchw, w_flats, biases):
    n, c0, h0, w0 = obs_nchw.shape
    oh1, ow1 = _conv_out(h0, 2), _conv_out(w0, 2)
    oh2, ow2 = oh1 - 2, ow1 - 2
    oh3, ow3 = oh2 - 2, ow2 - 2
    oh4, ow4 = oh3 - 2, ow3 - 2
    dims = ((oh1, ow1), (oh2, ow2), (oh3, ow3), (oh4, ow4))
    s4 = oh4 * ow4

    # One XLA layout pass on the (small) raw obs: NCHW -> NHWC + 2x2 parity
    # de-interleave.  No dtype up-cast here (uint8 would pass straight through);
    # all stride-2 reads inside the kernel become contiguous slices.
    ph, pw = (h0 + 1) // 2, (w0 + 1) // 2
    x = jnp.transpose(obs_nchw, (0, 2, 3, 1))
    x = jnp.pad(x, ((0, 0), (0, 2 * ph - h0), (0, 2 * pw - w0), (0, 0)))
    planes = x.reshape(n, ph, 2, pw, 2, c0).transpose(0, 2, 4, 1, 3, 5)
    planes = planes.reshape(n, 4, ph, pw, c0)            # plane = 2*row_par + col_par

    chans = [c0, 32, 32, 32, 32]
    flops = 0
    for li, (oh, ow) in enumerate(dims):
        flops += 2 * oh * ow * 9 * chans[li] * chans[li + 1]
    flops *= n
    bytes_accessed = int(planes.size * planes.dtype.itemsize
                         + sum(w.size * w.dtype.itemsize for w in w_flats)
                         + sum(b.size * 4 for b in biases)
                         + n * 32 * s4 * 4)

    in_specs = [pl.BlockSpec((None, 4, ph, pw, c0), lambda i: (i, 0, 0, 0, 0))]
    args = [planes]
    for wf, b in zip(w_flats, biases):
        # Constant index_maps: weights/biases stay VMEM-resident across the grid.
        in_specs.append(pl.BlockSpec(wf.shape, lambda i: (0, 0)))
        in_specs.append(pl.BlockSpec((1, 32), lambda i: (0, 0)))
        args.append(wf)
        args.append(b.reshape(1, 32).astype(jnp.float32))

    kernel = functools.partial(_encoder_kernel, dims=dims)

    out = pl.pallas_call(
        kernel,
        out_shape=jax.ShapeDtypeStruct((n, 32, s4), jnp.float32),
        grid=(n,),
        in_specs=in_specs,
        out_specs=pl.BlockSpec((None, 32, s4), lambda i: (i, 0, 0)),
        compiler_params=pltpu.CompilerParams(
            dimension_semantics=("parallel",),
            vmem_limit_bytes=32 * 1024 * 1024),
        cost_estimate=pl.CostEstimate(
            flops=flops, transcendentals=0, bytes_accessed=bytes_accessed),
    )(*args)
    # Contiguous (free) reshape; the NCHW flatten order was produced in-kernel.
    return out.reshape(n, 32 * s4)


class Encoder:
    """JAX/Pallas port of drqv2.Encoder (4x Conv3x3 + ReLU, NCHW flatten)."""

    def __init__(self, obs_shape, key):
        assert len(obs_shape) == 3
        c_in = obs_shape[0]
        chans = [c_in, 32, 32, 32, 32]
        keys = jax.random.split(key, 4)
        self.weights = []    # (3,3,cin,cout) HWIO f32 masters (bf16-representable)
        self.w_flats = []    # (9*cin, cout) bf16 MXU operands (K = taps x cin)
        self.biases = []
        for i in range(4):
            # Deterministic synthetic init (stand-in for the orthogonal init in
            # utils.weight_init); conv biases are zero as in the reference.
            w = 0.05 * jax.random.normal(
                keys[i], (3, 3, chans[i], chans[i + 1]), dtype=jnp.float32)
            w = w.astype(jnp.bfloat16).astype(jnp.float32)
            self.weights.append(w)
            self.w_flats.append(
                w.reshape(9 * chans[i], chans[i + 1]).astype(jnp.bfloat16))
            self.biases.append(jnp.zeros((chans[i + 1],), jnp.float32))

    def __call__(self, obs_nchw):
        return _encoder_pallas(obs_nchw, self.w_flats, self.biases)


def _reference_forward(obs_nchw, enc):
    """Pure-JAX reference (lax conv, f32) for correctness checking."""
    x = jnp.transpose(obs_nchw, (0, 2, 3, 1)).astype(jnp.float32) / 255.0 - 0.5
    strides = (2, 1, 1, 1)
    for i in range(4):
        s = strides[i]
        x = jax.lax.conv_general_dilated(
            x, enc.weights[i], (s, s), "VALID",
            dimension_numbers=("NHWC", "HWIO", "NHWC"))
        x = jax.nn.relu(x + enc.biases[i])
    x = jnp.transpose(x, (0, 3, 1, 2))
    return x.reshape(x.shape[0], -1)


if __name__ == "__main__":
    key = jax.random.PRNGKey(0)
    k_obs, k_enc = jax.random.split(key)

    obs_shape = (4, 20, 20)  # (C, H, W) — small analogue of (9, 84, 84)
    batch = 2
    obs = jax.random.uniform(k_obs, (batch,) + obs_shape,
                             minval=0.0, maxval=255.0, dtype=jnp.float32)

    enc = Encoder(obs_shape, k_enc)
    out = jax.block_until_ready(enc(obs))

    # spatial: 20 -> 9 -> 7 -> 5 -> 3  =>  repr dim = 32 * 3 * 3
    assert out.shape == (batch, 32 * 3 * 3), out.shape

    ref = jax.block_until_ready(_reference_forward(obs, enc))
    err = float(jnp.max(jnp.abs(out - ref)))
    # Tolerance accounts for bf16 MXU inputs / bf16 inter-layer activations.
    assert jnp.allclose(out, ref, atol=2e-2, rtol=2e-2), err

    print("KERNEL_OK")
</pallas_src>

<mosaic_0001>
module attributes {stable_mosaic.version = 11 : i64} {
  func.func @_encoder_kernel(%arg0: i32, %arg1: memref<1x4x10x10x4xf32, #tpu.memory_space<vmem>>, %arg2: memref<36x32xbf16, #tpu.memory_space<vmem>>, %arg3: memref<1x32xf32, #tpu.memory_space<vmem>>, %arg4: memref<288x32xbf16, #tpu.memory_space<vmem>>, %arg5: memref<1x32xf32, #tpu.memory_space<vmem>>, %arg6: memref<288x32xbf16, #tpu.memory_space<vmem>>, %arg7: memref<1x32xf32, #tpu.memory_space<vmem>>, %arg8: memref<288x32xbf16, #tpu.memory_space<vmem>>, %arg9: memref<1x32xf32, #tpu.memory_space<vmem>>, %arg10: memref<1x32x9xf32, #tpu.memory_space<vmem>>) attributes {dimension_semantics = [#tpu.dimension_semantics<parallel>], iteration_bounds = array<i64: 2>, scalar_prefetch = 0 : i64, scratch_operands = 0 : i64, tpu.core_type = #tpu.core_type<tc>, window_params = [{transform_indices = @transform_0, window_bounds = array<i64: 1, 4, 10, 10, 4>}, {pipeline_mode = #tpu.pipeline_mode<synchronous>, transform_indices = @transform_1, window_bounds = array<i64: 36, 32>}, {pipeline_mode = #tpu.pipeline_mode<synchronous>, transform_indices = @transform_2, window_bounds = array<i64: 1, 32>}, {pipeline_mode = #tpu.pipeline_mode<synchronous>, transform_indices = @transform_3, window_bounds = array<i64: 288, 32>}, {pipeline_mode = #tpu.pipeline_mode<synchronous>, transform_indices = @transform_4, window_bounds = array<i64: 1, 32>}, {pipeline_mode = #tpu.pipeline_mode<synchronous>, transform_indices = @transform_5, window_bounds = array<i64: 288, 32>}, {pipeline_mode = #tpu.pipeline_mode<synchronous>, transform_indices = @transform_6, window_bounds = array<i64: 1, 32>}, {pipeline_mode = #tpu.pipeline_mode<synchronous>, transform_indices = @transform_7, window_bounds = array<i64: 288, 32>}, {pipeline_mode = #tpu.pipeline_mode<synchronous>, transform_indices = @transform_8, window_bounds = array<i64: 1, 32>}, {transform_indices = @transform_9, window_bounds = array<i64: 1, 32, 9>}]} {
    %c0 = arith.constant 0 : index
    %c0_0 = arith.constant 0 : index
    %c0_1 = arith.constant 0 : index
    %c0_2 = arith.constant 0 : index
    %c0_3 = arith.constant 0 : index
    %0 = vector.load %arg1[%c0, %c0_0, %c0_1, %c0_2, %c0_3] : memref<1x4x10x10x4xf32, #tpu.memory_space<vmem>>, vector<1x4x10x10x4xf32>
    %1 = vector.shape_cast %0 : vector<1x4x10x10x4xf32> to vector<4x10x10x4xf32>
    %cst = arith.constant 0.00392156886 : f32
    %2 = vector.broadcast %cst : f32 to vector<4x10x10x4xf32>
    %3 = arith.mulf %1, %2 : vector<4x10x10x4xf32>
    %cst_4 = arith.constant 5.000000e-01 : f32
    %4 = vector.broadcast %cst_4 : f32 to vector<4x10x10x4xf32>
    %5 = arith.subf %3, %4 : vector<4x10x10x4xf32>
    %6 = arith.truncf %5 : vector<4x10x10x4xf32> to vector<4x10x10x4xbf16>
    %c0_5 = arith.constant 0 : index
    %c0_6 = arith.constant 0 : index
    %7 = vector.load %arg2[%c0_5, %c0_6] : memref<36x32xbf16, #tpu.memory_space<vmem>>, vector<36x32xbf16>
    %c0_7 = arith.constant 0 : index
    %c0_8 = arith.constant 0 : index
    %8 = vector.load %arg3[%c0_7, %c0_8] : memref<1x32xf32, #tpu.memory_space<vmem>>, vector<1x32xf32>
    %9 = vector.extract_strided_slice %6 {offsets = [0, 0, 0, 0], sizes = [1, 10, 10, 4], strides = [1, 1, 1, 1]} : vector<4x10x10x4xbf16> to vector<1x10x10x4xbf16>
    %10 = vector.shape_cast %9 : vector<1x10x10x4xbf16> to vector<10x10x4xbf16>
    %11 = vector.extract_strided_slice %10 {offsets = [0, 0, 0], sizes = [9, 9, 4], strides = [1, 1, 1]} : vector<10x10x4xbf16> to vector<9x9x4xbf16>
    %12 = vector.extract_strided_slice %6 {offsets = [1, 0, 0, 0], sizes = [1, 10, 10, 4], strides = [1, 1, 1, 1]} : vector<4x10x10x4xbf16> to vector<1x10x10x4xbf16>
    %13 = vector.shape_cast %12 : vector<1x10x10x4xbf16> to vector<10x10x4xbf16>
    %14 = vector.extract_strided_slice %13 {offsets = [0, 0, 0], sizes = [9, 9, 4], strides = [1, 1, 1]} : vector<10x10x4xbf16> to vector<9x9x4xbf16>
    %15 = vector.extract_strided_slice %6 {offsets = [0, 0, 0, 0], sizes = [1, 10, 10, 4], strides = [1, 1, 1, 1]} : vector<4x10x10x4xbf16> to vector<1x10x10x4xbf16>
    %16 = vector.shape_cast %15 : vector<1x10x10x4xbf16> to vector<10x10x4xbf16>
    %17 = vector.extract_strided_slice %16 {offsets = [0, 1, 0], sizes = [9, 9, 4], strides = [1, 1, 1]} : vector<10x10x4xbf16> to vector<9x9x4xbf16>
    %18 = vector.extract_strided_slice %6 {offsets = [2, 0, 0, 0], sizes = [1, 10, 10, 4], strides = [1, 1, 1, 1]} : vector<4x10x10x4xbf16> to vector<1x10x10x4xbf16>
    %19 = vector.shape_cast %18 : vector<1x10x10x4xbf16> to vector<10x10x4xbf16>
    %20 = vector.extract_strided_slice %19 {offsets = [0, 0, 0], sizes = [9, 9, 4], strides = [1, 1, 1]} : vector<10x10x4xbf16> to vector<9x9x4xbf16>
    %21 = vector.extract_strided_slice %6 {offsets = [3, 0, 0, 0], sizes = [1, 10, 10, 4], strides = [1, 1, 1, 1]} : vector<4x10x10x4xbf16> to vector<1x10x10x4xbf16>
    %22 = vector.shape_cast %21 : vector<1x10x10x4xbf16> to vector<10x10x4xbf16>
    %23 = vector.extract_strided_slice %22 {offsets = [0, 0, 0], sizes = [9, 9, 4], strides = [1, 1, 1]} : vector<10x10x4xbf16> to vector<9x9x4xbf16>
    %24 = vector.extract_strided_slice %6 {offsets = [2, 0, 0, 0], sizes = [1, 10, 10, 4], strides = [1, 1, 1, 1]} : vector<4x10x10x4xbf16> to vector<1x10x10x4xbf16>
    %25 = vector.shape_cast %24 : vector<1x10x10x4xbf16> to vector<10x10x4xbf16>
    %26 = vector.extract_strided_slice %25 {offsets = [0, 1, 0], sizes = [9, 9, 4], strides = [1, 1, 1]} : vector<10x10x4xbf16> to vector<9x9x4xbf16>
    %27 = vector.extract_strided_slice %6 {offsets = [0, 0, 0, 0], sizes = [1, 10, 10, 4], strides = [1, 1, 1, 1]} : vector<4x10x10x4xbf16> to vector<1x10x10x4xbf16>
    %28 = vector.shape_cast %27 : vector<1x10x10x4xbf16> to vector<10x10x4xbf16>
    %29 = vector.extract_strided_slice %28 {offsets = [1, 0, 0], sizes = [9, 9, 4], strides = [1, 1, 1]} : vector<10x10x4xbf16> to vector<9x9x4xbf16>
    %30 = vector.extract_strided_slice %6 {offsets = [1, 0, 0, 0], sizes = [1, 10, 10, 4], strides = [1, 1, 1, 1]} : vector<4x10x10x4xbf16> to vector<1x10x10x4xbf16>
    %31 = vector.shape_cast %30 : vector<1x10x10x4xbf16> to vector<10x10x4xbf16>
    %32 = vector.extract_strided_slice %31 {offsets = [1, 0, 0], sizes = [9, 9, 4], strides = [1, 1, 1]} : vector<10x10x4xbf16> to vector<9x9x4xbf16>
    %33 = vector.extract_strided_slice %6 {offsets = [0, 0, 0, 0], sizes = [1, 10, 10, 4], strides = [1, 1, 1, 1]} : vector<4x10x10x4xbf16> to vector<1x10x10x4xbf16>
    %34 = vector.shape_cast %33 : vector<1x10x10x4xbf16> to vector<10x10x4xbf16>
    %35 = vector.extract_strided_slice %34 {offsets = [1, 1, 0], sizes = [9, 9, 4], strides = [1, 1, 1]} : vector<10x10x4xbf16> to vector<9x9x4xbf16>
    %36 = tpu.concatenate %11, %14, %17, %20, %23, %26, %29, %32, %35 in 2 : vector<9x9x4xbf16>, vector<9x9x4xbf16>, vector<9x9x4xbf16>, vector<9x9x4xbf16>, vector<9x9x4xbf16>, vector<9x9x4xbf16>, vector<9x9x4xbf16>, vector<9x9x4xbf16>, vector<9x9x4xbf16> -> vector<9x9x36xbf16>
    %37 = vector.extract_strided_slice %36 {offsets = [0, 0, 0], sizes = [1, 9, 36], strides = [1, 1, 1]} : vector<9x9x36xbf16> to vector<1x9x36xbf16>
    %38 = vector.shape_cast %37 : vector<1x9x36xbf16> to vector<9x36xbf16>
    %39 = vector.extract_strided_slice %36 {offsets = [1, 0, 0], sizes = [1, 9, 36], strides = [1, 1, 1]} : vector<9x9x36xbf16> to vector<1x9x36xbf16>
    %40 = vector.shape_cast %39 : vector<1x9x36xbf16> to vector<9x36xbf16>
    %41 = vector.extract_strided_slice %36 {offsets = [2, 0, 0], sizes = [1, 9, 36], strides = [1, 1, 1]} : vector<9x9x36xbf16> to vector<1x9x36xbf16>
    %42 = vector.shape_cast %41 : vector<1x9x36xbf16> to vector<9x36xbf16>
    %43 = vector.extract_strided_slice %36 {offsets = [3, 0, 0], sizes = [1, 9, 36], strides = [1, 1, 1]} : vector<9x9x36xbf16> to vector<1x9x36xbf16>
    %44 = vector.shape_cast %43 : vector<1x9x36xbf16> to vector<9x36xbf16>
    %45 = vector.extract_strided_slice %36 {offsets = [4, 0, 0], sizes = [1, 9, 36], strides = [1, 1, 1]} : vector<9x9x36xbf16> to vector<1x9x36xbf16>
    %46 = vector.shape_cast %45 : vector<1x9x36xbf16> to vector<9x36xbf16>
    %47 = vector.extract_strided_slice %36 {offsets = [5, 0, 0], sizes = [1, 9, 36], strides = [1, 1, 1]} : vector<9x9x36xbf16> to vector<1x9x36xbf16>
    %48 = vector.shape_cast %47 : vector<1x9x36xbf16> to vector<9x36xbf16>
    %49 = vector.extract_strided_slice %36 {offsets = [6, 0, 0], sizes = [1, 9, 36], strides = [1, 1, 1]} : vector<9x9x36xbf16> to vector<1x9x36xbf16>
    %50 = vector.shape_cast %49 : vector<1x9x36xbf16> to vector<9x36xbf16>
    %51 = vector.extract_strided_slice %36 {offsets = [7, 0, 0], sizes = [1, 9, 36], strides = [1, 1, 1]} : vector<9x9x36xbf16> to vector<1x9x36xbf16>
    %52 = vector.shape_cast %51 : vector<1x9x36xbf16> to vector<9x36xbf16>
    %53 = vector.extract_strided_slice %36 {offsets = [8, 0, 0], sizes = [1, 9, 36], strides = [1, 1, 1]} : vector<9x9x36xbf16> to vector<1x9x36xbf16>
    %54 = vector.shape_cast %53 : vector<1x9x36xbf16> to vector<9x36xbf16>
    %55 = tpu.concatenate %38, %40, %42, %44, %46, %48, %50, %52, %54 in 0 : vector<9x36xbf16>, vector<9x36xbf16>, vector<9x36xbf16>, vector<9x36xbf16>, vector<9x36xbf16>, vector<9x36xbf16>, vector<9x36xbf16>, vector<9x36xbf16>, vector<9x36xbf16> -> vector<81x36xbf16>
    %cst_9 = arith.constant dense<0.000000e+00> : vector<81x32xf32>
    %56 = tpu.matmul %55, %7, %cst_9 {dimension_numbers = #tpu.dot_dimension_numbers<[1], [0], [0], [1], [0, 0, 1, 1], [], []>} : vector<81x36xbf16>, vector<36x32xbf16>, vector<81x32xf32> -> vector<81x32xf32>
    %57 = vector.broadcast %8 : vector<1x32xf32> to vector<81x32xf32>
    %58 = arith.addf %56, %57 : vector<81x32xf32>
    %cst_10 = arith.constant 0.000000e+00 : f32
    %59 = vector.broadcast %cst_10 : f32 to vector<81x32xf32>
    %60 = arith.maximumf %58, %59 : vector<81x32xf32>
    %61 = arith.truncf %60 : vector<81x32xf32> to vector<81x32xbf16>
    %62 = vector.extract_strided_slice %61 {offsets = [0, 0], sizes = [9, 32], strides = [1, 1]} : vector<81x32xbf16> to vector<9x32xbf16>
    %63 = vector.extract_strided_slice %61 {offsets = [9, 0], sizes = [9, 32], strides = [1, 1]} : vector<81x32xbf16> to vector<9x32xbf16>
    %64 = vector.extract_strided_slice %61 {offsets = [18, 0], sizes = [9, 32], strides = [1, 1]} : vector<81x32xbf16> to vector<9x32xbf16>
    %65 = vector.extract_strided_slice %61 {offsets = [27, 0], sizes = [9, 32], strides = [1, 1]} : vector<81x32xbf16> to vector<9x32xbf16>
    %66 = vector.extract_strided_slice %61 {offsets = [36, 0], sizes = [9, 32], strides = [1, 1]} : vector<81x32xbf16> to vector<9x32xbf16>
    %67 = vector.extract_strided_slice %61 {offsets = [45, 0], sizes = [9, 32], strides = [1, 1]} : vector<81x32xbf16> to vector<9x32xbf16>
    %68 = vector.extract_strided_slice %61 {offsets = [54, 0], sizes = [9, 32], strides = [1, 1]} : vector<81x32xbf16> to vector<9x32xbf16>
    %69 = vector.extract_strided_slice %61 {offsets = [63, 0], sizes = [9, 32], strides = [1, 1]} : vector<81x32xbf16> to vector<9x32xbf16>
    %70 = vector.extract_strided_slice %61 {offsets = [72, 0], sizes = [9, 32], strides = [1, 1]} : vector<81x32xbf16> to vector<9x32xbf16>
    %71 = vector.shape_cast %62 : vector<9x32xbf16> to vector<1x9x32xbf16>
    %72 = vector.shape_cast %63 : vector<9x32xbf16> to vector<1x9x32xbf16>
    %73 = vector.shape_cast %64 : vector<9x32xbf16> to vector<1x9x32xbf16>
    %74 = vector.shape_cast %65 : vector<9x32xbf16> to vector<1x9x32xbf16>
    %75 = vector.shape_cast %66 : vector<9x32xbf16> to vector<1x9x32xbf16>
    %76 = vector.shape_cast %67 : vector<9x32xbf16> to vector<1x9x32xbf16>
    %77 = vector.shape_cast %68 : vector<9x32xbf16> to vector<1x9x32xbf16>
    %78 = vector.shape_cast %69 : vector<9x32xbf16> to vector<1x9x32xbf16>
    %79 = vector.shape_cast %70 : vector<9x32xbf16> to vector<1x9x32xbf16>
    %80 = tpu.concatenate %71, %72, %73, %74, %75, %76, %77, %78, %79 in 0 : vector<1x9x32xbf16>, vector<1x9x32xbf16>, vector<1x9x32xbf16>, vector<1x9x32xbf16>, vector<1x9x32xbf16>, vector<1x9x32xbf16>, vector<1x9x32xbf16>, vector<1x9x32xbf16>, vector<1x9x32xbf16> -> vector<9x9x32xbf16>
    %c0_11 = arith.constant 0 : index
    %c0_12 = arith.constant 0 : index
    %81 = vector.load %arg4[%c0_11, %c0_12] : memref<288x32xbf16, #tpu.memory_space<vmem>>, vector<288x32xbf16>
    %c0_13 = arith.constant 0 : index
    %c0_14 = arith.constant 0 : index
    %82 = vector.load %arg5[%c0_13, %c0_14] : memref<1x32xf32, #tpu.memory_space<vmem>>, vector<1x32xf32>
    %83 = vector.extract_strided_slice %80 {offsets = [0, 0, 0], sizes = [7, 7, 32], strides = [1, 1, 1]} : vector<9x9x32xbf16> to vector<7x7x32xbf16>
    %84 = vector.extract_strided_slice %80 {offsets = [0, 1, 0], sizes = [7, 7, 32], strides = [1, 1, 1]} : vector<9x9x32xbf16> to vector<7x7x32xbf16>
    %85 = vector.extract_strided_slice %80 {offsets = [0, 2, 0], sizes = [7, 7, 32], strides = [1, 1, 1]} : vector<9x9x32xbf16> to vector<7x7x32xbf16>
    %86 = vector.extract_strided_slice %80 {offsets = [1, 0, 0], sizes = [7, 7, 32], strides = [1, 1, 1]} : vector<9x9x32xbf16> to vector<7x7x32xbf16>
    %87 = vector.extract_strided_slice %80 {offsets = [1, 1, 0], sizes = [7, 7, 32], strides = [1, 1, 1]} : vector<9x9x32xbf16> to vector<7x7x32xbf16>
    %88 = vector.extract_strided_slice %80 {offsets = [1, 2, 0], sizes = [7, 7, 32], strides = [1, 1, 1]} : vector<9x9x32xbf16> to vector<7x7x32xbf16>
    %89 = vector.extract_strided_slice %80 {offsets = [2, 0, 0], sizes = [7, 7, 32], strides = [1, 1, 1]} : vector<9x9x32xbf16> to vector<7x7x32xbf16>
    %90 = vector.extract_strided_slice %80 {offsets = [2, 1, 0], sizes = [7, 7, 32], strides = [1, 1, 1]} : vector<9x9x32xbf16> to vector<7x7x32xbf16>
    %91 = vector.extract_strided_slice %80 {offsets = [2, 2, 0], sizes = [7, 7, 32], strides = [1, 1, 1]} : vector<9x9x32xbf16> to vector<7x7x32xbf16>
    %92 = tpu.concatenate %83, %84, %85, %86, %87, %88, %89, %90, %91 in 2 : vector<7x7x32xbf16>, vector<7x7x32xbf16>, vector<7x7x32xbf16>, vector<7x7x32xbf16>, vector<7x7x32xbf16>, vector<7x7x32xbf16>, vector<7x7x32xbf16>, vector<7x7x32xbf16>, vector<7x7x32xbf16> -> vector<7x7x288xbf16>
    %93 = vector.extract_strided_slice %92 {offsets = [0, 0, 0], sizes = [1, 7, 288], strides = [1, 1, 1]} : vector<7x7x288xbf16> to vector<1x7x288xbf16>
    %94 = vector.shape_cast %93 : vector<1x7x288xbf16> to vector<7x288xbf16>
    %95 = vector.extract_strided_slice %92 {offsets = [1, 0, 0], sizes = [1, 7, 288], strides = [1, 1, 1]} : vector<7x7x288xbf16> to vector<1x7x288xbf16>
    %96 = vector.shape_cast %95 : vector<1x7x288xbf16> to vector<7x288xbf16>
    %97 = vector.extract_strided_slice %92 {offsets = [2, 0, 0], sizes = [1, 7, 288], strides = [1, 1, 1]} : vector<7x7x288xbf16> to vector<1x7x288xbf16>
    %98 = vector.shape_cast %97 : vector<1x7x288xbf16> to vector<7x288xbf16>
    %99 = vector.extract_strided_slice %92 {offsets = [3, 0, 0], sizes = [1, 7, 288], strides = [1, 1, 1]} : vector<7x7x288xbf16> to vector<1x7x288xbf16>
    %100 = vector.shape_cast %99 : vector<1x7x288xbf16> to vector<7x288xbf16>
    %101 = vector.extract_strided_slice %92 {offsets = [4, 0, 0], sizes = [1, 7, 288], strides = [1, 1, 1]} : vector<7x7x288xbf16> to vector<1x7x288xbf16>
    %102 = vector.shape_cast %101 : vector<1x7x288xbf16> to vector<7x288xbf16>
    %103 = vector.extract_strided_slice %92 {offsets = [5, 0, 0], sizes = [1, 7, 288], strides = [1, 1, 1]} : vector<7x7x288xbf16> to vector<1x7x288xbf16>
    %104 = vector.shape_cast %103 : vector<1x7x288xbf16> to vector<7x288xbf16>
    %105 = vector.extract_strided_slice %92 {offsets = [6, 0, 0], sizes = [1, 7, 288], strides = [1, 1, 1]} : vector<7x7x288xbf16> to vector<1x7x288xbf16>
    %106 = vector.shape_cast %105 : vector<1x7x288xbf16> to vector<7x288xbf16>
    %107 = tpu.concatenate %94, %96, %98, %100, %102, %104, %106 in 0 : vector<7x288xbf16>, vector<7x288xbf16>, vector<7x288xbf16>, vector<7x288xbf16>, vector<7x288xbf16>, vector<7x288xbf16>, vector<7x288xbf16> -> vector<49x288xbf16>
    %cst_15 = arith.constant dense<0.000000e+00> : vector<49x32xf32>
    %108 = tpu.matmul %107, %81, %cst_15 {dimension_numbers = #tpu.dot_dimension_numbers<[1], [0], [0], [1], [0, 0, 1, 1], [], []>} : vector<49x288xbf16>, vector<288x32xbf16>, vector<49x32xf32> -> vector<49x32xf32>
    %109 = vector.broadcast %82 : vector<1x32xf32> to vector<49x32xf32>
    %110 = arith.addf %108, %109 : vector<49x32xf32>
    %cst_16 = arith.constant 0.000000e+00 : f32
    %111 = vector.broadcast %cst_16 : f32 to vector<49x32xf32>
    %112 = arith.maximumf %110, %111 : vector<49x32xf32>
    %113 = arith.truncf %112 : vector<49x32xf32> to vector<49x32xbf16>
    %114 = vector.extract_strided_slice %113 {offsets = [0, 0], sizes = [7, 32], strides = [1, 1]} : vector<49x32xbf16> to vector<7x32xbf16>
    %115 = vector.extract_strided_slice %113 {offsets = [7, 0], sizes = [7, 32], strides = [1, 1]} : vector<49x32xbf16> to vector<7x32xbf16>
    %116 = vector.extract_strided_slice %113 {offsets = [14, 0], sizes = [7, 32], strides = [1, 1]} : vector<49x32xbf16> to vector<7x32xbf16>
    %117 = vector.extract_strided_slice %113 {offsets = [21, 0], sizes = [7, 32], strides = [1, 1]} : vector<49x32xbf16> to vector<7x32xbf16>
    %118 = vector.extract_strided_slice %113 {offsets = [28, 0], sizes = [7, 32], strides = [1, 1]} : vector<49x32xbf16> to vector<7x32xbf16>
    %119 = vector.extract_strided_slice %113 {offsets = [35, 0], sizes = [7, 32], strides = [1, 1]} : vector<49x32xbf16> to vector<7x32xbf16>
    %120 = vector.extract_strided_slice %113 {offsets = [42, 0], sizes = [7, 32], strides = [1, 1]} : vector<49x32xbf16> to vector<7x32xbf16>
    %121 = vector.shape_cast %114 : vector<7x32xbf16> to vector<1x7x32xbf16>
    %122 = vector.shape_cast %115 : vector<7x32xbf16> to vector<1x7x32xbf16>
    %123 = vector.shape_cast %116 : vector<7x32xbf16> to vector<1x7x32xbf16>
    %124 = vector.shape_cast %117 : vector<7x32xbf16> to vector<1x7x32xbf16>
    %125 = vector.shape_cast %118 : vector<7x32xbf16> to vector<1x7x32xbf16>
    %126 = vector.shape_cast %119 : vector<7x32xbf16> to vector<1x7x32xbf16>
    %127 = vector.shape_cast %120 : vector<7x32xbf16> to vector<1x7x32xbf16>
    %128 = tpu.concatenate %121, %122, %123, %124, %125, %126, %127 in 0 : vector<1x7x32xbf16>, vector<1x7x32xbf16>, vector<1x7x32xbf16>, vector<1x7x32xbf16>, vector<1x7x32xbf16>, vector<1x7x32xbf16>, vector<1x7x32xbf16> -> vector<7x7x32xbf16>
    %c0_17 = arith.constant 0 : index
    %c0_18 = arith.constant 0 : index
    %129 = vector.load %arg6[%c0_17, %c0_18] : memref<288x32xbf16, #tpu.memory_space<vmem>>, vector<288x32xbf16>
    %c0_19 = arith.constant 0 : index
    %c0_20 = arith.constant 0 : index
    %130 = vector.load %arg7[%c0_19, %c0_20] : memref<1x32xf32, #tpu.memory_space<vmem>>, vector<1x32xf32>
    %131 = vector.extract_strided_slice %128 {offsets = [0, 0, 0], sizes = [5, 5, 32], strides = [1, 1, 1]} : vector<7x7x32xbf16> to vector<5x5x32xbf16>
    %132 = vector.extract_strided_slice %128 {offsets = [0, 1, 0], sizes = [5, 5, 32], strides = [1, 1, 1]} : vector<7x7x32xbf16> to vector<5x5x32xbf16>
    %133 = vector.extract_strided_slice %128 {offsets = [0, 2, 0], sizes = [5, 5, 32], strides = [1, 1, 1]} : vector<7x7x32xbf16> to vector<5x5x32xbf16>
    %134 = vector.extract_strided_slice %128 {offsets = [1, 0, 0], sizes = [5, 5, 32], strides = [1, 1, 1]} : vector<7x7x32xbf16> to vector<5x5x32xbf16>
    %135 = vector.extract_strided_slice %128 {offsets = [1, 1, 0], sizes = [5, 5, 32], strides = [1, 1, 1]} : vector<7x7x32xbf16> to vector<5x5x32xbf16>
    %136 = vector.extract_strided_slice %128 {offsets = [1, 2, 0], sizes = [5, 5, 32], strides = [1, 1, 1]} : vector<7x7x32xbf16> to vector<5x5x32xbf16>
    %137 = vector.extract_strided_slice %128 {offsets = [2, 0, 0], sizes = [5, 5, 32], strides = [1, 1, 1]} : vector<7x7x32xbf16> to vector<5x5x32xbf16>
    %138 = vector.extract_strided_slice %128 {offsets = [2, 1, 0], sizes = [5, 5, 32], strides = [1, 1, 1]} : vector<7x7x32xbf16> to vector<5x5x32xbf16>
    %139 = vector.extract_strided_slice %128 {offsets = [2, 2, 0], sizes = [5, 5, 32], strides = [1, 1, 1]} : vector<7x7x32xbf16> to vector<5x5x32xbf16>
    %140 = tpu.concatenate %131, %132, %133, %134, %135, %136, %137, %138, %139 in 2 : vector<5x5x32xbf16>, vector<5x5x32xbf16>, vector<5x5x32xbf16>, vector<5x5x32xbf16>, vector<5x5x32xbf16>, vector<5x5x32xbf16>, vector<5x5x32xbf16>, vector<5x5x32xbf16>, vector<5x5x32xbf16> -> vector<5x5x288xbf16>
    %141 = vector.extract_strided_slice %140 {offsets = [0, 0, 0], sizes = [1, 5, 288], strides = [1, 1, 1]} : vector<5x5x288xbf16> to vector<1x5x288xbf16>
    %142 = vector.shape_cast %141 : vector<1x5x288xbf16> to vector<5x288xbf16>
    %143 = vector.extract_strided_slice %140 {offsets = [1, 0, 0], sizes = [1, 5, 288], strides = [1, 1, 1]} : vector<5x5x288xbf16> to vector<1x5x288xbf16>
    %144 = vector.shape_cast %143 : vector<1x5x288xbf16> to vector<5x288xbf16>
    %145 = vector.extract_strided_slice %140 {offsets = [2, 0, 0], sizes = [1, 5, 288], strides = [1, 1, 1]} : vector<5x5x288xbf16> to vector<1x5x288xbf16>
    %146 = vector.shape_cast %145 : vector<1x5x288xbf16> to vector<5x288xbf16>
    %147 = vector.extract_strided_slice %140 {offsets = [3, 0, 0], sizes = [1, 5, 288], strides = [1, 1, 1]} : vector<5x5x288xbf16> to vector<1x5x288xbf16>
    %148 = vector.shape_cast %147 : vector<1x5x288xbf16> to vector<5x288xbf16>
    %149 = vector.extract_strided_slice %140 {offsets = [4, 0, 0], sizes = [1, 5, 288], strides = [1, 1, 1]} : vector<5x5x288xbf16> to vector<1x5x288xbf16>
    %150 = vector.shape_cast %149 : vector<1x5x288xbf16> to vector<5x288xbf16>
    %151 = tpu.concatenate %142, %144, %146, %148, %150 in 0 : vector<5x288xbf16>, vector<5x288xbf16>, vector<5x288xbf16>, vector<5x288xbf16>, vector<5x288xbf16> -> vector<25x288xbf16>
    %cst_21 = arith.constant dense<0.000000e+00> : vector<25x32xf32>
    %152 = tpu.matmul %151, %129, %cst_21 {dimension_numbers = #tpu.dot_dimension_numbers<[1], [0], [0], [1], [0, 0, 1, 1], [], []>} : vector<25x288xbf16>, vector<288x32xbf16>, vector<25x32xf32> -> vector<25x32xf32>
    %153 = vector.broadcast %130 : vector<1x32xf32> to vector<25x32xf32>
    %154 = arith.addf %152, %153 : vector<25x32xf32>
    %cst_22 = arith.constant 0.000000e+00 : f32
    %155 = vector.broadcast %cst_22 : f32 to vector<25x32xf32>
    %156 = arith.maximumf %154, %155 : vector<25x32xf32>
    %157 = arith.truncf %156 : vector<25x32xf32> to vector<25x32xbf16>
    %158 = vector.extract_strided_slice %157 {offsets = [0, 0], sizes = [5, 32], strides = [1, 1]} : vector<25x32xbf16> to vector<5x32xbf16>
    %159 = vector.extract_strided_slice %157 {offsets = [5, 0], sizes = [5, 32], strides = [1, 1]} : vector<25x32xbf16> to vector<5x32xbf16>
    %160 = vector.extract_strided_slice %157 {offsets = [10, 0], sizes = [5, 32], strides = [1, 1]} : vector<25x32xbf16> to vector<5x32xbf16>
    %161 = vector.extract_strided_slice %157 {offsets = [15, 0], sizes = [5, 32], strides = [1, 1]} : vector<25x32xbf16> to vector<5x32xbf16>
    %162 = vector.extract_strided_slice %157 {offsets = [20, 0], sizes = [5, 32], strides = [1, 1]} : vector<25x32xbf16> to vector<5x32xbf16>
    %163 = vector.shape_cast %158 : vector<5x32xbf16> to vector<1x5x32xbf16>
    %164 = vector.shape_cast %159 : vector<5x32xbf16> to vector<1x5x32xbf16>
    %165 = vector.shape_cast %160 : vector<5x32xbf16> to vector<1x5x32xbf16>
    %166 = vector.shape_cast %161 : vector<5x32xbf16> to vector<1x5x32xbf16>
    %167 = vector.shape_cast %162 : vector<5x32xbf16> to vector<1x5x32xbf16>
    %168 = tpu.concatenate %163, %164, %165, %166, %167 in 0 : vector<1x5x32xbf16>, vector<1x5x32xbf16>, vector<1x5x32xbf16>, vector<1x5x32xbf16>, vector<1x5x32xbf16> -> vector<5x5x32xbf16>
    %c0_23 = arith.constant 0 : index
    %c0_24 = arith.constant 0 : index
    %169 = vector.load %arg8[%c0_23, %c0_24] : memref<288x32xbf16, #tpu.memory_space<vmem>>, vector<288x32xbf16>
    %c0_25 = arith.constant 0 : index
    %c0_26 = arith.constant 0 : index
    %170 = vector.load %arg9[%c0_25, %c0_26] : memref<1x32xf32, #tpu.memory_space<vmem>>, vector<1x32xf32>
    %171 = vector.extract_strided_slice %168 {offsets = [0, 0, 0], sizes = [3, 3, 32], strides = [1, 1, 1]} : vector<5x5x32xbf16> to vector<3x3x32xbf16>
    %172 = vector.extract_strided_slice %168 {offsets = [0, 1, 0], sizes = [3, 3, 32], strides = [1, 1, 1]} : vector<5x5x32xbf16> to vector<3x3x32xbf16>
    %173 = vector.extract_strided_slice %168 {offsets = [0, 2, 0], sizes = [3, 3, 32], strides = [1, 1, 1]} : vector<5x5x32xbf16> to vector<3x3x32xbf16>
    %174 = vector.extract_strided_slice %168 {offsets = [1, 0, 0], sizes = [3, 3, 32], strides = [1, 1, 1]} : vector<5x5x32xbf16> to vector<3x3x32xbf16>
    %175 = vector.extract_strided_slice %168 {offsets = [1, 1, 0], sizes = [3, 3, 32], strides = [1, 1, 1]} : vector<5x5x32xbf16> to vector<3x3x32xbf16>
    %176 = vector.extract_strided_slice %168 {offsets = [1, 2, 0], sizes = [3, 3, 32], strides = [1, 1, 1]} : vector<5x5x32xbf16> to vector<3x3x32xbf16>
    %177 = vector.extract_strided_slice %168 {offsets = [2, 0, 0], sizes = [3, 3, 32], strides = [1, 1, 1]} : vector<5x5x32xbf16> to vector<3x3x32xbf16>
    %178 = vector.extract_strided_slice %168 {offsets = [2, 1, 0], sizes = [3, 3, 32], strides = [1, 1, 1]} : vector<5x5x32xbf16> to vector<3x3x32xbf16>
    %179 = vector.extract_strided_slice %168 {offsets = [2, 2, 0], sizes = [3, 3, 32], strides = [1, 1, 1]} : vector<5x5x32xbf16> to vector<3x3x32xbf16>
    %180 = tpu.concatenate %171, %172, %173, %174, %175, %176, %177, %178, %179 in 2 : vector<3x3x32xbf16>, vector<3x3x32xbf16>, vector<3x3x32xbf16>, vector<3x3x32xbf16>, vector<3x3x32xbf16>, vector<3x3x32xbf16>, vector<3x3x32xbf16>, vector<3x3x32xbf16>, vector<3x3x32xbf16> -> vector<3x3x288xbf16>
    %181 = vector.extract_strided_slice %180 {offsets = [0, 0, 0], sizes = [1, 3, 288], strides = [1, 1, 1]} : vector<3x3x288xbf16> to vector<1x3x288xbf16>
    %182 = vector.shape_cast %181 : vector<1x3x288xbf16> to vector<3x288xbf16>
    %183 = vector.extract_strided_slice %180 {offsets = [1, 0, 0], sizes = [1, 3, 288], strides = [1, 1, 1]} : vector<3x3x288xbf16> to vector<1x3x288xbf16>
    %184 = vector.shape_cast %183 : vector<1x3x288xbf16> to vector<3x288xbf16>
    %185 = vector.extract_strided_slice %180 {offsets = [2, 0, 0], sizes = [1, 3, 288], strides = [1, 1, 1]} : vector<3x3x288xbf16> to vector<1x3x288xbf16>
    %186 = vector.shape_cast %185 : vector<1x3x288xbf16> to vector<3x288xbf16>
    %187 = tpu.concatenate %182, %184, %186 in 0 : vector<3x288xbf16>, vector<3x288xbf16>, vector<3x288xbf16> -> vector<9x288xbf16>
    %cst_27 = arith.constant dense<0.000000e+00> : vector<9x32xf32>
    %188 = tpu.matmul %187, %169, %cst_27 {dimension_numbers = #tpu.dot_dimension_numbers<[1], [0], [0], [1], [0, 0, 1, 1], [], []>} : vector<9x288xbf16>, vector<288x32xbf16>, vector<9x32xf32> -> vector<9x32xf32>
    %189 = vector.broadcast %170 : vector<1x32xf32> to vector<9x32xf32>
    %190 = arith.addf %188, %189 : vector<9x32xf32>
    %cst_28 = arith.constant 0.000000e+00 : f32
    %191 = vector.broadcast %cst_28 : f32 to vector<9x32xf32>
    %192 = arith.maximumf %190, %191 : vector<9x32xf32>
    %193 = tpu.transpose %192, [1, 0] : vector<9x32xf32> -> vector<32x9xf32>
    %c0_29 = arith.constant 0 : index
    %c0_30 = arith.constant 0 : index
    %c0_31 = arith.constant 0 : index
    %194 = vector.load %arg10[%c0_29, %c0_30, %c0_31] : memref<1x32x9xf32, #tpu.memory_space<vmem>>, vector<1x32x9xf32>
    %195 = vector.shape_cast %194 : vector<1x32x9xf32> to vector<32x9xf32>
    %196 = vector.shape_cast %193 : vector<32x9xf32> to vector<1x32x9xf32>
    tpu.vector_store %arg10[%c0_29, %c0_30, %c0_31], %196 {strides = array<i32>} : memref<1x32x9xf32, #tpu.memory_space<vmem>>, vector<1x32x9xf32>,
    return
  }
  func.func @transform_0(%arg0: i32) -> (i32, i32, i32, i32, i32) {
    %c0_i32 = arith.constant 0 : i32
    %c0_i32_0 = arith.constant 0 : i32
    %c0_i32_1 = arith.constant 0 : i32
    %c0_i32_2 = arith.constant 0 : i32
    %c0_i32_3 = arith.constant 0 : i32
    return %arg0, %c0_i32, %c0_i32_0, %c0_i32_1, %c0_i32_2 : i32, i32, i32, i32, i32
  }
  func.func @transform_1(%arg0: i32) -> (i32, i32) {
    %c0_i32 = arith.constant 0 : i32
    %c0_i32_0 = arith.constant 0 : i32
    %c0_i32_1 = arith.constant 0 : i32
    return %c0_i32, %c0_i32_0 : i32, i32
  }
  func.func @transform_2(%arg0: i32) -> (i32, i32) {
    %c0_i32 = arith.constant 0 : i32
    %c0_i32_0 = arith.constant 0 : i32
    %c0_i32_1 = arith.constant 0 : i32
    return %c0_i32, %c0_i32_0 : i32, i32
  }
  func.func @transform_3(%arg0: i32) -> (i32, i32) {
    %c0_i32 = arith.constant 0 : i32
    %c0_i32_0 = arith.constant 0 : i32
    %c0_i32_1 = arith.constant 0 : i32
    return %c0_i32, %c0_i32_0 : i32, i32
  }
  func.func @transform_4(%arg0: i32) -> (i32, i32) {
    %c0_i32 = arith.constant 0 : i32
    %c0_i32_0 = arith.constant 0 : i32
    %c0_i32_1 = arith.constant 0 : i32
    return %c0_i32, %c0_i32_0 : i32, i32
  }
  func.func @transform_5(%arg0: i32) -> (i32, i32) {
    %c0_i32 = arith.constant 0 : i32
    %c0_i32_0 = arith.constant 0 : i32
    %c0_i32_1 = arith.constant 0 : i32
    return %c0_i32, %c0_i32_0 : i32, i32
  }
  func.func @transform_6(%arg0: i32) -> (i32, i32) {
    %c0_i32 = arith.constant 0 : i32
    %c0_i32_0 = arith.constant 0 : i32
    %c0_i32_1 = arith.constant 0 : i32
    return %c0_i32, %c0_i32_0 : i32, i32
  }
  func.func @transform_7(%arg0: i32) -> (i32, i32) {
    %c0_i32 = arith.constant 0 : i32
    %c0_i32_0 = arith.constant 0 : i32
    %c0_i32_1 = arith.constant 0 : i32
    return %c0_i32, %c0_i32_0 : i32, i32
  }
  func.func @transform_8(%arg0: i32) -> (i32, i32) {
    %c0_i32 = arith.constant 0 : i32
    %c0_i32_0 = arith.constant 0 : i32
    %c0_i32_1 = arith.constant 0 : i32
    return %c0_i32, %c0_i32_0 : i32, i32
  }
  func.func @transform_9(%arg0: i32) -> (i32, i32, i32) {
    %c0_i32 = arith.constant 0 : i32
    %c0_i32_0 = arith.constant 0 : i32
    %c0_i32_1 = arith.constant 0 : i32
    return %arg0, %c0_i32, %c0_i32_0 : i32, i32, i32
  }
}

</mosaic_0001>

<llo_original>
// kernel: tpu_custom_call.1
$region0: #{tpu_custom_call.1}
  #allocation0 [shape = 'u32[]', space=smem, size = 0x4, offset = 0x4, fixed_abs, tag = 'smem constant byte address 0x4 - core index']
  #allocation1 [shape = 'u32[72,128]{1,0:T(1,128)}', space=vmem, size = 0x9000, scoped, tag = 'internal scratch']
  %s0 = inlined_call_operand.vmem [shape: f32[2,4,10,10,4], index: 0, kind: input, shape index: {}]
  %s1 = inlined_call_operand.vmem [shape: bf16[36,32], index: 1, kind: input, shape index: {}]
  %s2 = inlined_call_operand.vmem [shape: f32[1,32], index: 2, kind: input, shape index: {}]
  %s3 = inlined_call_operand.vmem [shape: bf16[288,32], index: 3, kind: input, shape index: {}]
  %s4 = inlined_call_operand.vmem [shape: f32[1,32], index: 4, kind: input, shape index: {}]
  %s5 = inlined_call_operand.vmem [shape: bf16[288,32], index: 5, kind: input, shape index: {}]
  %s6 = inlined_call_operand.vmem [shape: f32[1,32], index: 6, kind: input, shape index: {}]
  %s7 = inlined_call_operand.vmem [shape: bf16[288,32], index: 7, kind: input, shape index: {}]
  %s8 = inlined_call_operand.vmem [shape: f32[1,32], index: 8, kind: input, shape index: {}]
  %s9 = inlined_call_operand.vmem [shape: f32[2,32,9], index: 9, kind: output, shape index: {}]
  %s10 = sld [smem:[#allocation0]]
  $region69: #{tpu_custom_call.1} parent=0
    _
  %s12 = ssub.s32 1, %s10
  %s13 = scalar_select 0, %s12, %s10
  loop: start=0, step=1, limit=4
  $region2: #{tpu_custom_call.1} parent=0 // loop_pre_header
    _
  $region3: #{tpu_custom_call.1} parent=0 // loop_header
    %s15 = sphi 0, %s19
    %p16 = scmp.ge.s32.totalorder %s15, 4
    %s25 = sphi 0, %s27
    %s28 = sphi 0, %s25
    %s29 = sphi 0, %s28
    %s45 = sphi 0, %s29
    %s49 = sphi 0, %s49
    %s51 = sphi 0, %s49
    %s52 = sphi 0, %s51
    %s66 = sphi 0, %s52
    %s70 = sphi 0, %s70
    %s72 = sphi 0, %s70
    %s73 = sphi 0, %s72
    %s87 = sphi 0, %s73
    %s91 = sphi 0, %s91
    %s93 = sphi 0, %s91
    %s94 = sphi 0, %s93
    %s108 = sphi 0, %s94
    %s112 = sphi 0, %s112
    %s114 = sphi 0, %s112
    %s115 = sphi 0, %s114
    %s129 = sphi 0, %s115
    %s133 = sphi 0, %s133
    %s135 = sphi 0, %s133
    %s136 = sphi 0, %s135
    %s150 = sphi 0, %s136
    %s154 = sphi 0, %s154
    %s156 = sphi 0, %s154
    %s157 = sphi 0, %s156
    %s171 = sphi 0, %s157
    %s175 = sphi 0, %s175
    %s177 = sphi 0, %s175
    %s178 = sphi 0, %s177
    %s192 = sphi 0, %s178
    %s196 = sphi 0, %s196
    %s198 = sphi 0, %s196
    %s199 = sphi 0, %s198
    %s213 = sphi 0, %s199
    %s219 = sphi 0, %s221
    %s222 = sphi 0, %s219
    %s223 = sphi 0, %s222
    %s239 = sphi 0, %s223
  $region4: #{tpu_custom_call.1} parent=0 // loop_header_branch
    %18 = sbr.rel (%p16) target = $region8
  $region5: #{tpu_custom_call.1} parent=0 // loop_body
    %s20 = ssub.s32 %s15, 1
    %s21 = ssub.s32 %s15, 2
    %s22 = sadd.s32 %s15, 1
    %s23 = ssub.s32 %s15, %s22
    %p24 = scmp.eq.s32.totalorder %s23, 0
    %s26 = sadd.s32 %s25, 1
    %s27 = scalar_select %p24, %s25, %s26
    %p30 = pneg %p24
    %p31 = scmp.eq.s32.totalorder %s15, 1
    %p32 = por %p30, %p31
    %p33 = scmp.ne.s32.totalorder %s25, %s28
    %p34 = scmp.eq.s32.totalorder %s15, 0
    %p35 = por %p33, %p34
    %p36 = scmp.ne.s32.totalorder %s25, %s28
    %p37 = scmp.eq.s32.totalorder %s20, 1
    %p38 = por %p36, %p37
    %p39 = scmp.ne.s32.totalorder %s28, %s29
    %p40 = scmp.eq.s32.totalorder %s20, 0
    %p41 = por %p39, %p40
    %p42 = scmp.ne.s32.totalorder %s28, %s29
    %p43 = scmp.eq.s32.totalorder %s21, 1
    %p44 = por %p42, %p43
    %p46 = scmp.ne.s32.totalorder %s29, %s45
    %p47 = scmp.eq.s32.totalorder %s21, 0
    %p48 = por %p46, %p47
    %s50 = sadd.s32 %s49, 1
    %p53 = scmp.eq.s32.totalorder %s15, 1
    %p54 = scmp.ne.s32.totalorder %s49, %s51
    %p55 = scmp.eq.s32.totalorder %s15, 0
    %p56 = por %p54, %p55
    %p57 = scmp.ne.s32.totalorder %s49, %s51
    %p58 = scmp.eq.s32.totalorder %s20, 1
    %p59 = por %p57, %p58
    %p60 = scmp.ne.s32.totalorder %s51, %s52
    %p61 = scmp.eq.s32.totalorder %s20, 0
    %p62 = por %p60, %p61
    %p63 = scmp.ne.s32.totalorder %s51, %s52
    %p64 = scmp.eq.s32.totalorder %s21, 1
    %p65 = por %p63, %p64
    %p67 = scmp.ne.s32.totalorder %s52, %s66
    %p68 = scmp.eq.s32.totalorder %s21, 0
    %p69 = por %p67, %p68
    %s71 = sadd.s32 %s70, 1
    %p74 = scmp.eq.s32.totalorder %s15, 1
    %p75 = scmp.ne.s32.totalorder %s70, %s72
    %p76 = scmp.eq.s32.totalorder %s15, 0
    %p77 = por %p75, %p76
    %p78 = scmp.ne.s32.totalorder %s70, %s72
    %p79 = scmp.eq.s32.totalorder %s20, 1
    %p80 = por %p78, %p79
    %p81 = scmp.ne.s32.totalorder %s72, %s73
    %p82 = scmp.eq.s32.totalorder %s20, 0
    %p83 = por %p81, %p82
    %p84 = scmp.ne.s32.totalorder %s72, %s73
    %p85 = scmp.eq.s32.totalorder %s21, 1
    %p86 = por %p84, %p85
    %p88 = scmp.ne.s32.totalorder %s73, %s87
    %p89 = scmp.eq.s32.totalorder %s21, 0
    %p90 = por %p88, %p89
    %s92 = sadd.s32 %s91, 1
    %p95 = scmp.eq.s32.totalorder %s15, 1
    %p96 = scmp.ne.s32.totalorder %s91, %s93
    %p97 = scmp.eq.s32.totalorder %s15, 0
    %p98 = por %p96, %p97
    %p99 = scmp.ne.s32.totalorder %s91, %s93
    %p100 = scmp.eq.s32.totalorder %s20, 1
    %p101 = por %p99, %p100
    %p102 = scmp.ne.s32.totalorder %s93, %s94
    %p103 = scmp.eq.s32.totalorder %s20, 0
    %p104 = por %p102, %p103
    %p105 = scmp.ne.s32.totalorder %s93, %s94
    %p106 = scmp.eq.s32.totalorder %s21, 1
    %p107 = por %p105, %p106
    %p109 = scmp.ne.s32.totalorder %s94, %s108
    %p110 = scmp.eq.s32.totalorder %s21, 0
    %p111 = por %p109, %p110
    %s113 = sadd.s32 %s112, 1
    %p116 = scmp.eq.s32.totalorder %s15, 1
    %p117 = scmp.ne.s32.totalorder %s112, %s114
    %p118 = scmp.eq.s32.totalorder %s15, 0
    %p119 = por %p117, %p118
    %p120 = scmp.ne.s32.totalorder %s112, %s114
    %p121 = scmp.eq.s32.totalorder %s20, 1
    %p122 = por %p120, %p121
    %p123 = scmp.ne.s32.totalorder %s114, %s115
    %p124 = scmp.eq.s32.totalorder %s20, 0
    %p125 = por %p123, %p124
    %p126 = scmp.ne.s32.totalorder %s114, %s115
    %p127 = scmp.eq.s32.totalorder %s21, 1
    %p128 = por %p126, %p127
    %p130 = scmp.ne.s32.totalorder %s115, %s129
    %p131 = scmp.eq.s32.totalorder %s21, 0
    %p132 = por %p130, %p131
    %s134 = sadd.s32 %s133, 1
    %p137 = scmp.eq.s32.totalorder %s15, 1
    %p138 = scmp.ne.s32.totalorder %s133, %s135
    %p139 = scmp.eq.s32.totalorder %s15, 0
    %p140 = por %p138, %p139
    %p141 = scmp.ne.s32.totalorder %s133, %s135
    %p142 = scmp.eq.s32.totalorder %s20, 1
    %p143 = por %p141, %p142
    %p144 = scmp.ne.s32.totalorder %s135, %s136
    %p145 = scmp.eq.s32.totalorder %s20, 0
    %p146 = por %p144, %p145
    %p147 = scmp.ne.s32.totalorder %s135, %s136
    %p148 = scmp.eq.s32.totalorder %s21, 1
    %p149 = por %p147, %p148
    %p151 = scmp.ne.s32.totalorder %s136, %s150
    %p152 = scmp.eq.s32.totalorder %s21, 0
    %p153 = por %p151, %p152
    %s155 = sadd.s32 %s154, 1
    %p158 = scmp.eq.s32.totalorder %s15, 1
    %p159 = scmp.ne.s32.totalorder %s154, %s156
    %p160 = scmp.eq.s32.totalorder %s15, 0
    %p161 = por %p159, %p160
    %p162 = scmp.ne.s32.totalorder %s154, %s156
    %p163 = scmp.eq.s32.totalorder %s20, 1
    %p164 = por %p162, %p163
    %p165 = scmp.ne.s32.totalorder %s156, %s157
    %p166 = scmp.eq.s32.totalorder %s20, 0
    %p167 = por %p165, %p166
    %p168 = scmp.ne.s32.totalorder %s156, %s157
    %p169 = scmp.eq.s32.totalorder %s21, 1
    %p170 = por %p168, %p169
    %p172 = scmp.ne.s32.totalorder %s157, %s171
    %p173 = scmp.eq.s32.totalorder %s21, 0
    %p174 = por %p172, %p173
    %s176 = sadd.s32 %s175, 1
    %p179 = scmp.eq.s32.totalorder %s15, 1
    %p180 = scmp.ne.s32.totalorder %s175, %s177
    %p181 = scmp.eq.s32.totalorder %s15, 0
    %p182 = por %p180, %p181
    %p183 = scmp.ne.s32.totalorder %s175, %s177
    %p184 = scmp.eq.s32.totalorder %s20, 1
    %p185 = por %p183, %p184
    %p186 = scmp.ne.s32.totalorder %s177, %s178
    %p187 = scmp.eq.s32.totalorder %s20, 0
    %p188 = por %p186, %p187
    %p189 = scmp.ne.s32.totalorder %s177, %s178
    %p190 = scmp.eq.s32.totalorder %s21, 1
    %p191 = por %p189, %p190
    %p193 = scmp.ne.s32.totalorder %s178, %s192
    %p194 = scmp.eq.s32.totalorder %s21, 0
    %p195 = por %p193, %p194
    %s197 = sadd.s32 %s196, 1
    %p200 = scmp.eq.s32.totalorder %s15, 1
    %p201 = scmp.ne.s32.totalorder %s196, %s198
    %p202 = scmp.eq.s32.totalorder %s15, 0
    %p203 = por %p201, %p202
    %p204 = scmp.ne.s32.totalorder %s196, %s198
    %p205 = scmp.eq.s32.totalorder %s20, 1
    %p206 = por %p204, %p205
    %p207 = scmp.ne.s32.totalorder %s198, %s199
    %p208 = scmp.eq.s32.totalorder %s20, 0
    %p209 = por %p207, %p208
    %p210 = scmp.ne.s32.totalorder %s198, %s199
    %p211 = scmp.eq.s32.totalorder %s21, 1
    %p212 = por %p210, %p211
    %p214 = scmp.ne.s32.totalorder %s199, %s213
    %p215 = scmp.eq.s32.totalorder %s21, 0
    %p216 = por %p214, %p215
    %s217 = ssub.s32 %s15, %s22
    %p218 = scmp.eq.s32.totalorder %s217, 0
    %s220 = sadd.s32 %s219, 1
    %s221 = scalar_select %p218, %s219, %s220
    %p224 = pneg %p218
    %p225 = scmp.eq.s32.totalorder %s15, 1
    %p226 = por %p224, %p225
    %p227 = scmp.ne.s32.totalorder %s219, %s222
    %p228 = scmp.eq.s32.totalorder %s15, 0
    %p229 = por %p227, %p228
    %p230 = scmp.ne.s32.totalorder %s219, %s222
    %p231 = scmp.eq.s32.totalorder %s20, 1
    %p232 = por %p230, %p231
    %p233 = scmp.ne.s32.totalorder %s222, %s223
    %p234 = scmp.eq.s32.totalorder %s20, 0
    %p235 = por %p233, %p234
    %p236 = scmp.ne.s32.totalorder %s222, %s223
    %p237 = scmp.eq.s32.totalorder %s21, 1
    %p238 = por %p236, %p237
    %p240 = scmp.ne.s32.totalorder %s223, %s239
    %p241 = scmp.eq.s32.totalorder %s21, 0
    %p242 = por %p240, %p241
    %p243 = scmp.le.s32.totalorder 1, %s15
    %p244 = scmp.lt.s32.totalorder %s15, 3
    %p245 = pnand %p243, %p244
    %p246 = pneg %p245
    // Predicated region
    $region9: #{tpu_custom_call.1} parent=5 // pred_check
      _
    $region10: #{tpu_custom_call.1} parent=5 // pred_check_branch
      %248 = sbr.rel (%p245) target = $region12
    $region11: #{tpu_custom_call.1} parent=5 // pred_region
      %s249 = ssub.s32 %s15, 1
      // Predicated region
      $region13: #{tpu_custom_call.1} parent=11 // pred_check
        %p250 = pneg %p62
      $region14: #{tpu_custom_call.1} parent=11 // pred_check_branch
        %252 = sbr.rel (%p250) target = $region16
      $region15: #{tpu_custom_call.1} parent=11 // pred_region
        _
      $region16: #{tpu_custom_call.1} parent=11 // pred_fallthru
        _
      // Predicated region
      $region17: #{tpu_custom_call.1} parent=11 // pred_check
        %p253 = pneg %p83
      $region18: #{tpu_custom_call.1} parent=11 // pred_check_branch
        %255 = sbr.rel (%p253) target = $region20
      $region19: #{tpu_custom_call.1} parent=11 // pred_region
        _
      $region20: #{tpu_custom_call.1} parent=11 // pred_fallthru
        _
      // Predicated region
      $region21: #{tpu_custom_call.1} parent=11 // pred_check
        %p256 = pneg %p104
      $region22: #{tpu_custom_call.1} parent=11 // pred_check_branch
        %258 = sbr.rel (%p256) target = $region24
      $region23: #{tpu_custom_call.1} parent=11 // pred_region
        _
      $region24: #{tpu_custom_call.1} parent=11 // pred_fallthru
        _
      // Predicated region
      $region25: #{tpu_custom_call.1} parent=11 // pred_check
        %p259 = pneg %p125
      $region26: #{tpu_custom_call.1} parent=11 // pred_check_branch
        %261 = sbr.rel (%p259) target = $region28
      $region27: #{tpu_custom_call.1} parent=11 // pred_region
        _
      $region28: #{tpu_custom_call.1} parent=11 // pred_fallthru
        _
      // Predicated region
      $region29: #{tpu_custom_call.1} parent=11 // pred_check
        %p262 = pneg %p146
      $region30: #{tpu_custom_call.1} parent=11 // pred_check_branch
        %264 = sbr.rel (%p262) target = $region32
      $region31: #{tpu_custom_call.1} parent=11 // pred_region
        _
      $region32: #{tpu_custom_call.1} parent=11 // pred_fallthru
        _
      // Predicated region
      $region33: #{tpu_custom_call.1} parent=11 // pred_check
        %p265 = pneg %p167
      $region34: #{tpu_custom_call.1} parent=11 // pred_check_branch
        %267 = sbr.rel (%p265) target = $region36
      $region35: #{tpu_custom_call.1} parent=11 // pred_region
        _
      $region36: #{tpu_custom_call.1} parent=11 // pred_fallthru
        _
      // Predicated region
      $region37: #{tpu_custom_call.1} parent=11 // pred_check
        %p268 = pneg %p188
      $region38: #{tpu_custom_call.1} parent=11 // pred_check_branch
        %270 = sbr.rel (%p268) target = $region40
      $region39: #{tpu_custom_call.1} parent=11 // pred_region
        _
      $region40: #{tpu_custom_call.1} parent=11 // pred_fallthru
        _
      // Predicated region
      $region41: #{tpu_custom_call.1} parent=11 // pred_check
        %p271 = pneg %p209
      $region42: #{tpu_custom_call.1} parent=11 // pred_check_branch
        %273 = sbr.rel (%p271) target = $region44
      $region43: #{tpu_custom_call.1} parent=11 // pred_region
        _
      $region44: #{tpu_custom_call.1} parent=11 // pred_fallthru
        _
    $region12: #{tpu_custom_call.1} parent=5 // pred_fallthru
      _
    %p274 = scmp.lt.s32.totalorder %s15, 2
    // Predicated region
    $region45: #{tpu_custom_call.1} parent=5 // pred_check
      %p275 = pneg %p274
    $region46: #{tpu_custom_call.1} parent=5 // pred_check_branch
      %277 = sbr.rel (%p275) target = $region48
    $region47: #{tpu_custom_call.1} parent=5 // pred_region
      // Predicated region
      $region49: #{tpu_custom_call.1} parent=47 // pred_check
        %p278 = pneg %p35
      $region50: #{tpu_custom_call.1} parent=47 // pred_check_branch
        %280 = sbr.rel (%p278) target = $region52
      $region51: #{tpu_custom_call.1} parent=47 // pred_region
        %p281 = scmp.lt.s32.totalorder %s15, 1
        %s282 = scalar_select %p281, %s15, 1
        %s283 = smul.addr %s282, 80
        %s284 = smul.addr %s283, 8
        %s285 = scalar_lea.vmem %s0, %s284
      $region52: #{tpu_custom_call.1} parent=47 // pred_fallthru
        _
    $region48: #{tpu_custom_call.1} parent=5 // pred_fallthru
      _
    %p286 = scmp.le.s32.totalorder 1, %s15
    %p287 = scmp.lt.s32.totalorder %s15, 3
    %p288 = pnand %p286, %p287
    %p289 = pneg %p288
    // Predicated region
    $region53: #{tpu_custom_call.1} parent=5 // pred_check
      _
    $region54: #{tpu_custom_call.1} parent=5 // pred_check_branch
      %291 = sbr.rel (%p288) target = $region56
    $region55: #{tpu_custom_call.1} parent=5 // pred_region
      %s292 = ssub.s32 %s15, 1
      %p293 = scmp.lt.s32.totalorder %s20, 1
      %s294 = scalar_select %p293, %s20, 1
      %s295 = smul.addr %s294, 80
      %s296 = smul.addr %s295, 8
      %s297 = scalar_lea.vmem %s0, %s296
      %p298 = pneg %p41
      %p299 = pneg %p38
      %p300 = pneg %p62
      %p301 = pneg %p59
      %p302 = pneg %p83
      %p303 = pneg %p80
      %p304 = pneg %p104
      %p305 = pneg %p101
      %p306 = pneg %p125
      %p307 = pneg %p122
      %p308 = pneg %p146
      %p309 = pneg %p143
      %p310 = pneg %p167
      %p311 = pneg %p164
      %p312 = pneg %p188
      %p313 = pneg %p185
      %p314 = pneg %p209
      %p315 = pneg %p206
      %p316 = pneg %p235
      %p317 = pneg %p232
      %p318 = scmp.lt.s32.totalorder %s20, 1
      %s319 = scalar_select %p318, %s20, 1
      %s320 = smul.addr %s319, 4
      %s321 = smul.addr %s320, 8
      %s322 = scalar_lea.vmem %s9, %s321
      %p323 = scmp.lt.s32.totalorder %s20, 1
      %s324 = scalar_select %p323, %s20, 1
      %s325 = smul.addr %s324, 80
      %s326 = smul.addr %s325, 8
      %s327 = scalar_lea.vmem %s0, %s326
      %p328 = scmp.lt.s32.totalorder %s20, 1
      %s329 = scalar_select %p328, %s20, 1
      %s330 = smul.addr %s329, 4
      %s331 = smul.addr %s330, 8
      %s332 = scalar_lea.vmem %s9, %s331
      %v334 = vld [vmem:[%s327] sm:$0xff]
      %v335 = vld [vmem:[%s327 + $0x8] sm:$0x3]
      %v336 = vld [vmem:[%s327 + $0x10] sm:$0xff]
      %v337 = vld [vmem:[%s327 + $0x18] sm:$0x3]
      %v338 = vld [vmem:[%s327 + $0x20] sm:$0xff]
      %v339 = vld [vmem:[%s327 + $0x28] sm:$0x3]
      %v340 = vld [vmem:[%s327 + $0x30] sm:$0xff]
      %v341 = vld [vmem:[%s327 + $0x38] sm:$0x3]
      %v342 = vld [vmem:[%s327 + $0x40] sm:$0xff]
      %v343 = vld [vmem:[%s327 + $0x48] sm:$0x3]
      %v344 = vld [vmem:[%s327 + $0x50] sm:$0xff]
      %v345 = vld [vmem:[%s327 + $0x58] sm:$0x3]
      %v346 = vld [vmem:[%s327 + $0x60] sm:$0xff]
      %v347 = vld [vmem:[%s327 + $0x68] sm:$0x3]
      %v348 = vld [vmem:[%s327 + $0x70] sm:$0xff]
      %v349 = vld [vmem:[%s327 + $0x78] sm:$0x3]
      %v350 = vld [vmem:[%s327 + $0x80] sm:$0xff]
      %v351 = vld [vmem:[%s327 + $0x88] sm:$0x3]
      %v352 = vld [vmem:[%s327 + $0x90] sm:$0xff]
      %v353 = vld [vmem:[%s327 + $0x98] sm:$0x3]
      %v354 = vld [vmem:[%s327 + $0xa0] sm:$0xff]
      %v355 = vld [vmem:[%s327 + $0xa8] sm:$0x3]
      %v356 = vld [vmem:[%s327 + $0xb0] sm:$0xff]
      %v357 = vld [vmem:[%s327 + $0xb8] sm:$0x3]
      %v358 = vld [vmem:[%s327 + $0xc0] sm:$0xff]
      %v359 = vld [vmem:[%s327 + $0xc8] sm:$0x3]
      %v360 = vld [vmem:[%s327 + $0xd0] sm:$0xff]
      %v361 = vld [vmem:[%s327 + $0xd8] sm:$0x3]
      %v362 = vld [vmem:[%s327 + $0xe0] sm:$0xff]
      %v363 = vld [vmem:[%s327 + $0xe8] sm:$0x3]
      %v364 = vld [vmem:[%s327 + $0xf0] sm:$0xff]
      %v365 = vld [vmem:[%s327 + $0xf8] sm:$0x3]
      %v366 = vld [vmem:[%s327 + $0x100] sm:$0xff]
      %v367 = vld [vmem:[%s327 + $0x108] sm:$0x3]
      %v368 = vld [vmem:[%s327 + $0x110] sm:$0xff]
      %v369 = vld [vmem:[%s327 + $0x118] sm:$0x3]
      %v370 = vld [vmem:[%s327 + $0x120] sm:$0xff]
      %v371 = vld [vmem:[%s327 + $0x128] sm:$0x3]
      %v372 = vld [vmem:[%s327 + $0x130] sm:$0xff]
      %v373 = vld [vmem:[%s327 + $0x138] sm:$0x3]
      %v374 = vld [vmem:[%s327 + $0x140] sm:$0xff]
      %v375 = vld [vmem:[%s327 + $0x148] sm:$0x3]
      %v376 = vld [vmem:[%s327 + $0x150] sm:$0xff]
      %v377 = vld [vmem:[%s327 + $0x158] sm:$0x3]
      %v378 = vld [vmem:[%s327 + $0x160] sm:$0xff]
      %v379 = vld [vmem:[%s327 + $0x168] sm:$0x3]
      %v380 = vld [vmem:[%s327 + $0x170] sm:$0xff]
      %v381 = vld [vmem:[%s327 + $0x178] sm:$0x3]
      %v382 = vld [vmem:[%s327 + $0x180] sm:$0xff]
      %v383 = vld [vmem:[%s327 + $0x188] sm:$0x3]
      %v384 = vld [vmem:[%s327 + $0x190] sm:$0xff]
      %v385 = vld [vmem:[%s327 + $0x198] sm:$0x3]
      %v386 = vld [vmem:[%s327 + $0x1a0] sm:$0xff]
      %v387 = vld [vmem:[%s327 + $0x1a8] sm:$0x3]
      %v388 = vld [vmem:[%s327 + $0x1b0] sm:$0xff]
      %v389 = vld [vmem:[%s327 + $0x1b8] sm:$0x3]
      %v390 = vld [vmem:[%s327 + $0x1c0] sm:$0xff]
      %v391 = vld [vmem:[%s327 + $0x1c8] sm:$0x3]
      %v392 = vld [vmem:[%s327 + $0x1e0] sm:$0xff]
      %v393 = vld [vmem:[%s327 + $0x1e8] sm:$0x3]
      %v394 = vld [vmem:[%s327 + $0x1f0] sm:$0xff]
      %v395 = vld [vmem:[%s327 + $0x1f8] sm:$0x3]
      %v396 = vld [vmem:[%s327 + $0x200] sm:$0xff]
      %v397 = vld [vmem:[%s327 + $0x208] sm:$0x3]
      %v398 = vld [vmem:[%s327 + $0x210] sm:$0xff]
      %v399 = vld [vmem:[%s327 + $0x218] sm:$0x3]
      %v400 = vld [vmem:[%s327 + $0x220] sm:$0xff]
      %v401 = vld [vmem:[%s327 + $0x228] sm:$0x3]
      %v402 = vld [vmem:[%s327 + $0x230] sm:$0xff]
      %v403 = vld [vmem:[%s327 + $0x238] sm:$0x3]
      %v404 = vld [vmem:[%s327 + $0x240] sm:$0xff]
      %v405 = vld [vmem:[%s327 + $0x248] sm:$0x3]
      %v406 = vld [vmem:[%s327 + $0x250] sm:$0xff]
      %v407 = vld [vmem:[%s327 + $0x258] sm:$0x3]
      %v408 = vld [vmem:[%s327 + $0x260] sm:$0xff]
      %v409 = vld [vmem:[%s327 + $0x268] sm:$0x3]
      %v410 = vmul.f32 %v334, 0.003921569
      %v411 = vmul.f32 %v335, 0.003921569
      %v412 = vmul.f32 %v336, 0.003921569
      %v413 = vmul.f32 %v337, 0.003921569
      %v414 = vmul.f32 %v338, 0.003921569
      %v415 = vmul.f32 %v339, 0.003921569
      %v416 = vmul.f32 %v340, 0.003921569
      %v417 = vmul.f32 %v341, 0.003921569
      %v418 = vmul.f32 %v342, 0.003921569
      %v419 = vmul.f32 %v343, 0.003921569
      %v420 = vmul.f32 %v344, 0.003921569
      %v421 = vmul.f32 %v345, 0.003921569
      %v422 = vmul.f32 %v346, 0.003921569
      %v423 = vmul.f32 %v347, 0.003921569
      %v424 = vmul.f32 %v348, 0.003921569
      %v425 = vmul.f32 %v349, 0.003921569
      %v426 = vmul.f32 %v350, 0.003921569
      %v427 = vmul.f32 %v351, 0.003921569
      %v428 = vmul.f32 %v352, 0.003921569
      %v429 = vmul.f32 %v353, 0.003921569
      %v430 = vmul.f32 %v354, 0.003921569
      %v431 = vmul.f32 %v355, 0.003921569
      %v432 = vmul.f32 %v356, 0.003921569
      %v433 = vmul.f32 %v357, 0.003921569
      %v434 = vmul.f32 %v358, 0.003921569
      %v435 = vmul.f32 %v359, 0.003921569
      %v436 = vmul.f32 %v360, 0.003921569
      %v437 = vmul.f32 %v361, 0.003921569
      %v438 = vmul.f32 %v362, 0.003921569
      %v439 = vmul.f32 %v363, 0.003921569
      %v440 = vmul.f32 %v364, 0.003921569
      %v441 = vmul.f32 %v365, 0.003921569
      %v442 = vmul.f32 %v366, 0.003921569
      %v443 = vmul.f32 %v367, 0.003921569
      %v444 = vmul.f32 %v368, 0.003921569
      %v445 = vmul.f32 %v369, 0.003921569
      %v446 = vmul.f32 %v370, 0.003921569
      %v447 = vmul.f32 %v371, 0.003921569
      %v448 = vmul.f32 %v372, 0.003921569
      %v449 = vmul.f32 %v373, 0.003921569
      %v450 = vmul.f32 %v374, 0.003921569
      %v451 = vmul.f32 %v375, 0.003921569
      %v452 = vmul.f32 %v376, 0.003921569
      %v453 = vmul.f32 %v377, 0.003921569
      %v454 = vmul.f32 %v378, 0.003921569
      %v455 = vmul.f32 %v379, 0.003921569
      %v456 = vmul.f32 %v380, 0.003921569
      %v457 = vmul.f32 %v381, 0.003921569
      %v458 = vmul.f32 %v382, 0.003921569
      %v459 = vmul.f32 %v383, 0.003921569
      %v460 = vmul.f32 %v384, 0.003921569
      %v461 = vmul.f32 %v385, 0.003921569
      %v462 = vmul.f32 %v386, 0.003921569
      %v463 = vmul.f32 %v387, 0.003921569
      %v464 = vmul.f32 %v388, 0.003921569
      %v465 = vmul.f32 %v389, 0.003921569
      %v466 = vmul.f32 %v390, 0.003921569
      %v467 = vmul.f32 %v391, 0.003921569
      %v468 = vmul.f32 %v392, 0.003921569
      %v469 = vmul.f32 %v393, 0.003921569
      %v470 = vmul.f32 %v394, 0.003921569
      %v471 = vmul.f32 %v395, 0.003921569
      %v472 = vmul.f32 %v396, 0.003921569
      %v473 = vmul.f32 %v397, 0.003921569
      %v474 = vmul.f32 %v398, 0.003921569
      %v475 = vmul.f32 %v399, 0.003921569
      %v476 = vmul.f32 %v400, 0.003921569
      %v477 = vmul.f32 %v401, 0.003921569
      %v478 = vmul.f32 %v402, 0.003921569
      %v479 = vmul.f32 %v403, 0.003921569
      %v480 = vmul.f32 %v404, 0.003921569
      %v481 = vmul.f32 %v405, 0.003921569
      %v482 = vmul.f32 %v406, 0.003921569
      %v483 = vmul.f32 %v407, 0.003921569
      %v484 = vmul.f32 %v408, 0.003921569
      %v485 = vmul.f32 %v409, 0.003921569
      %v486 = vsub.f32 %v410, 0.5
      %v487 = vsub.f32 %v411, 0.5
      %v488 = vsub.f32 %v412, 0.5
      %v489 = vsub.f32 %v413, 0.5
      %v490 = vsub.f32 %v414, 0.5
      %v491 = vsub.f32 %v415, 0.5
      %v492 = vsub.f32 %v416, 0.5
      %v493 = vsub.f32 %v417, 0.5
      %v494 = vsub.f32 %v418, 0.5
      %v495 = vsub.f32 %v419, 0.5
      %v496 = vsub.f32 %v420, 0.5
      %v497 = vsub.f32 %v421, 0.5
      %v498 = vsub.f32 %v422, 0.5
      %v499 = vsub.f32 %v423, 0.5
      %v500 = vsub.f32 %v424, 0.5
      %v501 = vsub.f32 %v425, 0.5
      %v502 = vsub.f32 %v426, 0.5
      %v503 = vsub.f32 %v427, 0.5
      %v504 = vsub.f32 %v428, 0.5
      %v505 = vsub.f32 %v429, 0.5
      %v506 = vsub.f32 %v430, 0.5
      %v507 = vsub.f32 %v431, 0.5
      %v508 = vsub.f32 %v432, 0.5
      %v509 = vsub.f32 %v433, 0.5
      %v510 = vsub.f32 %v434, 0.5
      %v511 = vsub.f32 %v435, 0.5
      %v512 = vsub.f32 %v436, 0.5
      %v513 = vsub.f32 %v437, 0.5
      %v514 = vsub.f32 %v438, 0.5
      %v515 = vsub.f32 %v439, 0.5
      %v516 = vsub.f32 %v440, 0.5
      %v517 = vsub.f32 %v441, 0.5
      %v518 = vsub.f32 %v442, 0.5
      %v519 = vsub.f32 %v443, 0.5
      %v520 = vsub.f32 %v444, 0.5
      %v521 = vsub.f32 %v445, 0.5
      %v522 = vsub.f32 %v446, 0.5
      %v523 = vsub.f32 %v447, 0.5
      %v524 = vsub.f32 %v448, 0.5
      %v525 = vsub.f32 %v449, 0.5
      %v526 = vsub.f32 %v450, 0.5
      %v527 = vsub.f32 %v451, 0.5
      %v528 = vsub.f32 %v452, 0.5
      %v529 = vsub.f32 %v453, 0.5
      %v530 = vsub.f32 %v454, 0.5
      %v531 = vsub.f32 %v455, 0.5
      %v532 = vsub.f32 %v456, 0.5
      %v533 = vsub.f32 %v457, 0.5
      %v534 = vsub.f32 %v458, 0.5
      %v535 = vsub.f32 %v459, 0.5
      %v536 = vsub.f32 %v460, 0.5
      %v537 = vsub.f32 %v461, 0.5
      %v538 = vsub.f32 %v462, 0.5
      %v539 = vsub.f32 %v463, 0.5
      %v540 = vsub.f32 %v464, 0.5
      %v541 = vsub.f32 %v465, 0.5
      %v542 = vsub.f32 %v466, 0.5
      %v543 = vsub.f32 %v467, 0.5
      %v544 = vsub.f32 %v468, 0.5
      %v545 = vsub.f32 %v469, 0.5
      %v546 = vsub.f32 %v470, 0.5
      %v547 = vsub.f32 %v471, 0.5
      %v548 = vsub.f32 %v472, 0.5
      %v549 = vsub.f32 %v473, 0.5
      %v550 = vsub.f32 %v474, 0.5
      %v551 = vsub.f32 %v475, 0.5
      %v552 = vsub.f32 %v476, 0.5
      %v553 = vsub.f32 %v477, 0.5
      %v554 = vsub.f32 %v478, 0.5
      %v555 = vsub.f32 %v479, 0.5
      %v556 = vsub.f32 %v480, 0.5
      %v557 = vsub.f32 %v481, 0.5
      %v558 = vsub.f32 %v482, 0.5
      %v559 = vsub.f32 %v483, 0.5
      %v560 = vsub.f32 %v484, 0.5
      %v561 = vsub.f32 %v485, 0.5
      %v562 = vpack.c.bf16 %v486, %v486
      %v563 = vpack.c.bf16 %v487, %v487
      %v564 = vpack.c.bf16 %v488, %v488
      %v565 = vpack.c.bf16 %v489, %v489
      %v566 = vpack.c.bf16 %v490, %v490
      %v567 = vpack.c.bf16 %v491, %v491
      %v568 = vpack.c.bf16 %v492, %v492
      %v569 = vpack.c.bf16 %v493, %v493
      %v570 = vpack.c.bf16 %v494, %v494
      %v571 = vpack.c.bf16 %v495, %v495
      %v572 = vpack.c.bf16 %v496, %v496
      %v573 = vpack.c.bf16 %v497, %v497
      %v574 = vpack.c.bf16 %v498, %v498
      %v575 = vpack.c.bf16 %v499, %v499
      %v576 = vpack.c.bf16 %v500, %v500
      %v577 = vpack.c.bf16 %v501, %v501
      %v578 = vpack.c.bf16 %v502, %v502
      %v579 = vpack.c.bf16 %v503, %v503
      %v580 = vpack.c.bf16 %v504, %v504
      %v581 = vpack.c.bf16 %v505, %v505
      %v582 = vpack.c.bf16 %v506, %v506
      %v583 = vpack.c.bf16 %v507, %v507
      %v584 = vpack.c.bf16 %v508, %v508
      %v585 = vpack.c.bf16 %v509, %v509
      %v586 = vpack.c.bf16 %v510, %v510
      %v587 = vpack.c.bf16 %v511, %v511
      %v588 = vpack.c.bf16 %v512, %v512
      %v589 = vpack.c.bf16 %v513, %v513
      %v590 = vpack.c.bf16 %v514, %v514
      %v591 = vpack.c.bf16 %v515, %v515
      %v592 = vpack.c.bf16 %v516, %v516
      %v593 = vpack.c.bf16 %v517, %v517
      %v594 = vpack.c.bf16 %v518, %v518
      %v595 = vpack.c.bf16 %v519, %v519
      %v596 = vpack.c.bf16 %v520, %v520
      %v597 = vpack.c.bf16 %v521, %v521
      %v598 = vpack.c.bf16 %v522, %v522
      %v599 = vpack.c.bf16 %v523, %v523
      %v600 = vpack.c.bf16 %v524, %v524
      %v601 = vpack.c.bf16 %v525, %v525
      %v602 = vpack.c.bf16 %v526, %v526
      %v603 = vpack.c.bf16 %v527, %v527
      %v604 = vpack.c.bf16 %v528, %v528
      %v605 = vpack.c.bf16 %v529, %v529
      %v606 = vpack.c.bf16 %v530, %v530
      %v607 = vpack.c.bf16 %v531, %v531
      %v608 = vpack.c.bf16 %v532, %v532
      %v609 = vpack.c.bf16 %v533, %v533
      %v610 = vpack.c.bf16 %v534, %v534
      %v611 = vpack.c.bf16 %v535, %v535
      %v612 = vpack.c.bf16 %v536, %v536
      %v613 = vpack.c.bf16 %v537, %v537
      %v614 = vpack.c.bf16 %v538, %v538
      %v615 = vpack.c.bf16 %v539, %v539
      %v616 = vpack.c.bf16 %v540, %v540
      %v617 = vpack.c.bf16 %v541, %v541
      %v618 = vpack.c.bf16 %v542, %v542
      %v619 = vpack.c.bf16 %v543, %v543
      %v620 = vpack.c.bf16 %v544, %v544
      %v621 = vpack.c.bf16 %v545, %v545
      %v622 = vpack.c.bf16 %v546, %v546
      %v623 = vpack.c.bf16 %v547, %v547
      %v624 = vpack.c.bf16 %v548, %v548
      %v625 = vpack.c.bf16 %v549, %v549
      %v626 = vpack.c.bf16 %v550, %v550
      %v627 = vpack.c.bf16 %v551, %v551
      %v628 = vpack.c.bf16 %v552, %v552
      %v629 = vpack.c.bf16 %v553, %v553
      %v630 = vpack.c.bf16 %v554, %v554
      %v631 = vpack.c.bf16 %v555, %v555
      %v632 = vpack.c.bf16 %v556, %v556
      %v633 = vpack.c.bf16 %v557, %v557
      %v634 = vpack.c.bf16 %v558, %v558
      %v635 = vpack.c.bf16 %v559, %v559
      %v636 = vpack.c.bf16 %v560, %v560
      %v637 = vpack.c.bf16 %v561, %v561
      %v638 = vld [vmem:[%s1] sm:$0xf]
      %v639 = vld [vmem:[%s1 + $0x4] sm:$0xf]
      %v640 = vld [vmem:[%s1 + $0x8] sm:$0xf]
      %v641 = vld [vmem:[%s1 + $0xc] sm:$0xf]
      %v642 = vld [vmem:[%s1 + $0x10] sm:$0x3]
      %v643 = vld [vmem:[%s2] sm:$0x1]
      %v662 = vunpack.c.l.b16 %v562
      %v663 = vunpack.c.l.b16 %v563
      %v664 = vunpack.c.l.b16 %v564
      %v665 = vunpack.c.l.b16 %v565
      %v666 = vunpack.c.l.b16 %v566
      %v667 = vunpack.c.l.b16 %v567
      %v668 = vunpack.c.l.b16 %v568
      %v669 = vunpack.c.l.b16 %v569
      %v670 = vunpack.c.l.b16 %v570
      %v671 = vunpack.c.l.b16 %v571
      %v672 = vunpack.c.l.b16 %v572
      %v673 = vunpack.c.l.b16 %v573
      %v674 = vunpack.c.l.b16 %v574
      %v675 = vunpack.c.l.b16 %v575
      %v676 = vunpack.c.l.b16 %v576
      %v677 = vunpack.c.l.b16 %v577
      %v678 = vunpack.c.l.b16 %v578
      %v679 = vunpack.c.l.b16 %v579
      %v680 = vpack.c.b16 %v663, %v662
      %v681 = vpack.c.b16 %v665, %v664
      %v682 = vpack.c.b16 %v667, %v666
      %v683 = vpack.c.b16 %v669, %v668
      %v684 = vpack.c.b16 %v671, %v670
      %v685 = vpack.c.b16 %v673, %v672
      %v686 = vpack.c.b16 %v675, %v674
      %v687 = vpack.c.b16 %v677, %v676
      %v688 = vpack.c.b16 %v679, %v678
      %v707 = vunpack.c.l.b16 %v582
      %v708 = vunpack.c.l.b16 %v583
      %v709 = vunpack.c.l.b16 %v584
      %v710 = vunpack.c.l.b16 %v585
      %v711 = vunpack.c.l.b16 %v586
      %v712 = vunpack.c.l.b16 %v587
      %v713 = vunpack.c.l.b16 %v588
      %v714 = vunpack.c.l.b16 %v589
      %v715 = vunpack.c.l.b16 %v590
      %v716 = vunpack.c.l.b16 %v591
      %v717 = vunpack.c.l.b16 %v592
      %v718 = vunpack.c.l.b16 %v593
      %v719 = vunpack.c.l.b16 %v594
      %v720 = vunpack.c.l.b16 %v595
      %v721 = vunpack.c.l.b16 %v596
      %v722 = vunpack.c.l.b16 %v597
      %v723 = vunpack.c.l.b16 %v598
      %v724 = vunpack.c.l.b16 %v599
      %v725 = vpack.c.b16 %v708, %v707
      %v726 = vpack.c.b16 %v710, %v709
      %v727 = vpack.c.b16 %v712, %v711
      %v728 = vpack.c.b16 %v714, %v713
      %v729 = vpack.c.b16 %v716, %v715
      %v730 = vpack.c.b16 %v718, %v717
      %v731 = vpack.c.b16 %v720, %v719
      %v732 = vpack.c.b16 %v722, %v721
      %v733 = vpack.c.b16 %v724, %v723
      %734 = vrot.lane.b32.xlu0 %v725, 4
      %v735 = vpop.permute.xlu0 %734
      %736 = vrot.lane.b32.xlu0 %v726, 4
      %v737 = vpop.permute.xlu0 %736
      %738 = vrot.lane.b32.xlu0 %v727, 4
      %v739 = vpop.permute.xlu0 %738
      %740 = vrot.lane.b32.xlu0 %v728, 4
      %v741 = vpop.permute.xlu0 %740
      %742 = vrot.lane.b32.xlu0 %v729, 4
      %v743 = vpop.permute.xlu0 %742
      %744 = vrot.lane.b32.xlu0 %v730, 4
      %v745 = vpop.permute.xlu0 %744
      %746 = vrot.lane.b32.xlu0 %v731, 4
      %v747 = vpop.permute.xlu0 %746
      %748 = vrot.lane.b32.xlu0 %v732, 4
      %v749 = vpop.permute.xlu0 %748
      %750 = vrot.lane.b32.xlu0 %v733, 4
      %v751 = vpop.permute.xlu0 %750
      %v753 = vshrl.u32 %v680, 16
      %v755 = vshll.u32 %v680, 16
      %v757 = vrot.slane %v755, 1
      %v758 = vor.u32 %v753, %v757
      %v760 = vshrl.u32 %v681, 16
      %v762 = vshll.u32 %v681, 16
      %v764 = vrot.slane %v762, 1
      %v765 = vor.u32 %v760, %v764
      %v767 = vshrl.u32 %v682, 16
      %v769 = vshll.u32 %v682, 16
      %v771 = vrot.slane %v769, 1
      %v772 = vor.u32 %v767, %v771
      %v774 = vshrl.u32 %v683, 16
      %v776 = vshll.u32 %v683, 16
      %v778 = vrot.slane %v776, 1
      %v779 = vor.u32 %v774, %v778
      %v781 = vshrl.u32 %v684, 16
      %v783 = vshll.u32 %v684, 16
      %v785 = vrot.slane %v783, 1
      %v786 = vor.u32 %v781, %v785
      %v788 = vshrl.u32 %v685, 16
      %v790 = vshll.u32 %v685, 16
      %v792 = vrot.slane %v790, 1
      %v793 = vor.u32 %v788, %v792
      %v795 = vshrl.u32 %v686, 16
      %v797 = vshll.u32 %v686, 16
      %v799 = vrot.slane %v797, 1
      %v800 = vor.u32 %v795, %v799
      %v802 = vshrl.u32 %v687, 16
      %v804 = vshll.u32 %v687, 16
      %v806 = vrot.slane %v804, 1
      %v807 = vor.u32 %v802, %v806
      %v809 = vshrl.u32 %v688, 16
      %v811 = vshll.u32 %v688, 16
      %v813 = vrot.slane %v811, 1
      %v814 = vor.u32 %v809, %v813
      %815 = vrot.lane.b32.xlu0 %v758, 8
      %v816 = vpop.permute.xlu0 %815
      %817 = vrot.lane.b32.xlu0 %v765, 8
      %v818 = vpop.permute.xlu0 %817
      %819 = vrot.lane.b32.xlu0 %v772, 8
      %v820 = vpop.permute.xlu0 %819
      %821 = vrot.lane.b32.xlu0 %v779, 8
      %v822 = vpop.permute.xlu0 %821
      %823 = vrot.lane.b32.xlu0 %v786, 8
      %v824 = vpop.permute.xlu0 %823
      %825 = vrot.lane.b32.xlu0 %v793, 8
      %v826 = vpop.permute.xlu0 %825
      %827 = vrot.lane.b32.xlu0 %v800, 8
      %v828 = vpop.permute.xlu0 %827
      %829 = vrot.lane.b32.xlu0 %v807, 8
      %v830 = vpop.permute.xlu0 %829
      %831 = vrot.lane.b32.xlu0 %v814, 8
      %v832 = vpop.permute.xlu0 %831
      %v851 = vunpack.c.l.b16 %v602
      %v852 = vunpack.c.l.b16 %v603
      %v853 = vunpack.c.l.b16 %v604
      %v854 = vunpack.c.l.b16 %v605
      %v855 = vunpack.c.l.b16 %v606
      %v856 = vunpack.c.l.b16 %v607
      %v857 = vunpack.c.l.b16 %v608
      %v858 = vunpack.c.l.b16 %v609
      %v859 = vunpack.c.l.b16 %v610
      %v860 = vunpack.c.l.b16 %v611
      %v861 = vunpack.c.l.b16 %v612
      %v862 = vunpack.c.l.b16 %v613
      %v863 = vunpack.c.l.b16 %v614
      %v864 = vunpack.c.l.b16 %v615
      %v865 = vunpack.c.l.b16 %v616
      %v866 = vunpack.c.l.b16 %v617
      %v867 = vunpack.c.l.b16 %v618
      %v868 = vunpack.c.l.b16 %v619
      %v869 = vpack.c.b16 %v852, %v851
      %v870 = vpack.c.b16 %v854, %v853
      %v871 = vpack.c.b16 %v856, %v855
      %v872 = vpack.c.b16 %v858, %v857
      %v873 = vpack.c.b16 %v860, %v859
      %v874 = vpack.c.b16 %v862, %v861
      %v875 = vpack.c.b16 %v864, %v863
      %v876 = vpack.c.b16 %v866, %v865
      %v877 = vpack.c.b16 %v868, %v867
      %878 = vrot.lane.b32.xlu0 %v869, 12
      %v879 = vpop.permute.xlu0 %878
      %880 = vrot.lane.b32.xlu0 %v870, 12
      %v881 = vpop.permute.xlu0 %880
      %882 = vrot.lane.b32.xlu0 %v871, 12
      %v883 = vpop.permute.xlu0 %882
      %884 = vrot.lane.b32.xlu0 %v872, 12
      %v885 = vpop.permute.xlu0 %884
      %886 = vrot.lane.b32.xlu0 %v873, 12
      %v887 = vpop.permute.xlu0 %886
      %888 = vrot.lane.b32.xlu0 %v874, 12
      %v889 = vpop.permute.xlu0 %888
      %890 = vrot.lane.b32.xlu0 %v875, 12
      %v891 = vpop.permute.xlu0 %890
      %892 = vrot.lane.b32.xlu0 %v876, 12
      %v893 = vpop.permute.xlu0 %892
      %894 = vrot.lane.b32.xlu0 %v877, 12
      %v895 = vpop.permute.xlu0 %894
      %v914 = vunpack.c.l.b16 %v620
      %v915 = vunpack.c.l.b16 %v621
      %v916 = vunpack.c.l.b16 %v622
      %v917 = vunpack.c.l.b16 %v623
      %v918 = vunpack.c.l.b16 %v624
      %v919 = vunpack.c.l.b16 %v625
      %v920 = vunpack.c.l.b16 %v626
      %v921 = vunpack.c.l.b16 %v627
      %v922 = vunpack.c.l.b16 %v628
      %v923 = vunpack.c.l.b16 %v629
      %v924 = vunpack.c.l.b16 %v630
      %v925 = vunpack.c.l.b16 %v631
      %v926 = vunpack.c.l.b16 %v632
      %v927 = vunpack.c.l.b16 %v633
      %v928 = vunpack.c.l.b16 %v634
      %v929 = vunpack.c.l.b16 %v635
      %v930 = vunpack.c.l.b16 %v636
      %v931 = vunpack.c.l.b16 %v637
      %v932 = vpack.c.b16 %v915, %v914
      %v933 = vpack.c.b16 %v917, %v916
      %v934 = vpack.c.b16 %v919, %v918
      %v935 = vpack.c.b16 %v921, %v920
      %v936 = vpack.c.b16 %v923, %v922
      %v937 = vpack.c.b16 %v925, %v924
      %v938 = vpack.c.b16 %v927, %v926
      %v939 = vpack.c.b16 %v929, %v928
      %v940 = vpack.c.b16 %v931, %v930
      %941 = vrot.lane.b32.xlu0 %v932, 16
      %v942 = vpop.permute.xlu0 %941
      %943 = vrot.lane.b32.xlu0 %v933, 16
      %v944 = vpop.permute.xlu0 %943
      %945 = vrot.lane.b32.xlu0 %v934, 16
      %v946 = vpop.permute.xlu0 %945
      %947 = vrot.lane.b32.xlu0 %v935, 16
      %v948 = vpop.permute.xlu0 %947
      %949 = vrot.lane.b32.xlu0 %v936, 16
      %v950 = vpop.permute.xlu0 %949
      %951 = vrot.lane.b32.xlu0 %v937, 16
      %v952 = vpop.permute.xlu0 %951
      %953 = vrot.lane.b32.xlu0 %v938, 16
      %v954 = vpop.permute.xlu0 %953
      %955 = vrot.lane.b32.xlu0 %v939, 16
      %v956 = vpop.permute.xlu0 %955
      %957 = vrot.lane.b32.xlu0 %v940, 16
      %v958 = vpop.permute.xlu0 %957
      %v960 = vshrl.u32 %v869, 16
      %v962 = vshll.u32 %v869, 16
      %v964 = vrot.slane %v962, 1
      %v965 = vor.u32 %v960, %v964
      %v967 = vshrl.u32 %v870, 16
      %v969 = vshll.u32 %v870, 16
      %v971 = vrot.slane %v969, 1
      %v972 = vor.u32 %v967, %v971
      %v974 = vshrl.u32 %v871, 16
      %v976 = vshll.u32 %v871, 16
      %v978 = vrot.slane %v976, 1
      %v979 = vor.u32 %v974, %v978
      %v981 = vshrl.u32 %v872, 16
      %v983 = vshll.u32 %v872, 16
      %v985 = vrot.slane %v983, 1
      %v986 = vor.u32 %v981, %v985
      %v988 = vshrl.u32 %v873, 16
      %v990 = vshll.u32 %v873, 16
      %v992 = vrot.slane %v990, 1
      %v993 = vor.u32 %v988, %v992
      %v995 = vshrl.u32 %v874, 16
      %v997 = vshll.u32 %v874, 16
      %v999 = vrot.slane %v997, 1
      %v1000 = vor.u32 %v995, %v999
      %v1002 = vshrl.u32 %v875, 16
      %v1004 = vshll.u32 %v875, 16
      %v1006 = vrot.slane %v1004, 1
      %v1007 = vor.u32 %v1002, %v1006
      %v1009 = vshrl.u32 %v876, 16
      %v1011 = vshll.u32 %v876, 16
      %v1013 = vrot.slane %v1011, 1
      %v1014 = vor.u32 %v1009, %v1013
      %v1016 = vshrl.u32 %v877, 16
      %v1018 = vshll.u32 %v877, 16
      %v1020 = vrot.slane %v1018, 1
      %v1021 = vor.u32 %v1016, %v1020
      %1022 = vrot.lane.b32.xlu0 %v965, 20
      %v1023 = vpop.permute.xlu0 %1022
      %1024 = vrot.lane.b32.xlu0 %v972, 20
      %v1025 = vpop.permute.xlu0 %1024
      %1026 = vrot.lane.b32.xlu0 %v979, 20
      %v1027 = vpop.permute.xlu0 %1026
      %1028 = vrot.lane.b32.xlu0 %v986, 20
      %v1029 = vpop.permute.xlu0 %1028
      %1030 = vrot.lane.b32.xlu0 %v993, 20
      %v1031 = vpop.permute.xlu0 %1030
      %1032 = vrot.lane.b32.xlu0 %v1000, 20
      %v1033 = vpop.permute.xlu0 %1032
      %1034 = vrot.lane.b32.xlu0 %v1007, 20
      %v1035 = vpop.permute.xlu0 %1034
      %1036 = vrot.lane.b32.xlu0 %v1014, 20
      %v1037 = vpop.permute.xlu0 %1036
      %1038 = vrot.lane.b32.xlu0 %v1021, 20
      %v1039 = vpop.permute.xlu0 %1038
      %v1042 = vunpack.c.l.b16 %v580
      %v1043 = vunpack.c.l.b16 %v581
      %v1044 = vpack.c.b16 %v1043, %v1042
      %1045 = vrot.lane.b32.xlu0 %v681, 24
      %v1046 = vpop.permute.xlu0 %1045
      %1047 = vrot.lane.b32.xlu0 %v682, 24
      %v1048 = vpop.permute.xlu0 %1047
      %1049 = vrot.lane.b32.xlu0 %v683, 24
      %v1050 = vpop.permute.xlu0 %1049
      %1051 = vrot.lane.b32.xlu0 %v684, 24
      %v1052 = vpop.permute.xlu0 %1051
      %1053 = vrot.lane.b32.xlu0 %v685, 24
      %v1054 = vpop.permute.xlu0 %1053
      %1055 = vrot.lane.b32.xlu0 %v686, 24
      %v1056 = vpop.permute.xlu0 %1055
      %1057 = vrot.lane.b32.xlu0 %v687, 24
      %v1058 = vpop.permute.xlu0 %1057
      %1059 = vrot.lane.b32.xlu0 %v688, 24
      %v1060 = vpop.permute.xlu0 %1059
      %1061 = vrot.lane.b32.xlu0 %v1044, 24
      %v1062 = vpop.permute.xlu0 %1061
      %v1065 = vunpack.c.l.b16 %v600
      %v1066 = vunpack.c.l.b16 %v601
      %v1067 = vpack.c.b16 %v1066, %v1065
      %1068 = vrot.lane.b32.xlu0 %v726, 28
      %v1069 = vpop.permute.xlu0 %1068
      %1070 = vrot.lane.b32.xlu0 %v727, 28
      %v1071 = vpop.permute.xlu0 %1070
      %1072 = vrot.lane.b32.xlu0 %v728, 28
      %v1073 = vpop.permute.xlu0 %1072
      %1074 = vrot.lane.b32.xlu0 %v729, 28
      %v1075 = vpop.permute.xlu0 %1074
      %1076 = vrot.lane.b32.xlu0 %v730, 28
      %v1077 = vpop.permute.xlu0 %1076
      %1078 = vrot.lane.b32.xlu0 %v731, 28
      %v1079 = vpop.permute.xlu0 %1078
      %1080 = vrot.lane.b32.xlu0 %v732, 28
      %v1081 = vpop.permute.xlu0 %1080
      %1082 = vrot.lane.b32.xlu0 %v733, 28
      %v1083 = vpop.permute.xlu0 %1082
      %1084 = vrot.lane.b32.xlu0 %v1067, 28
      %v1085 = vpop.permute.xlu0 %1084
      %v1087 = vshrl.u32 %v1044, 16
      %v1089 = vshll.u32 %v1044, 16
      %v1091 = vrot.slane %v1089, 1
      %v1092 = vor.u32 %v1087, %v1091
      %1093 = vrot.lane.b32.xlu0 %v765, 32
      %v1094 = vpop.permute.xlu0 %1093
      %1095 = vrot.lane.b32.xlu0 %v772, 32
      %v1096 = vpop.permute.xlu0 %1095
      %1097 = vrot.lane.b32.xlu0 %v779, 32
      %v1098 = vpop.permute.xlu0 %1097
      %1099 = vrot.lane.b32.xlu0 %v786, 32
      %v1100 = vpop.permute.xlu0 %1099
      %1101 = vrot.lane.b32.xlu0 %v793, 32
      %v1102 = vpop.permute.xlu0 %1101
      %1103 = vrot.lane.b32.xlu0 %v800, 32
      %v1104 = vpop.permute.xlu0 %1103
      %1105 = vrot.lane.b32.xlu0 %v807, 32
      %v1106 = vpop.permute.xlu0 %1105
      %1107 = vrot.lane.b32.xlu0 %v814, 32
      %v1108 = vpop.permute.xlu0 %1107
      %1109 = vrot.lane.b32.xlu0 %v1092, 32
      %v1110 = vpop.permute.xlu0 %1109
      %vm1111 = vcmask 31744
      %v1113 = vsel %vm1111, %v680, %v735
      %v1115 = vsel %vm1111, %v681, %v737
      %v1117 = vsel %vm1111, %v682, %v739
      %v1119 = vsel %vm1111, %v683, %v741
      %v1121 = vsel %vm1111, %v684, %v743
      %v1123 = vsel %vm1111, %v685, %v745
      %v1125 = vsel %vm1111, %v686, %v747
      %v1127 = vsel %vm1111, %v687, %v749
      %v1129 = vsel %vm1111, %v688, %v751
      %vm1130 = vcmask 64512
      %v1132 = vsel %vm1130, %v1113, %v816
      %v1134 = vsel %vm1130, %v1115, %v818
      %v1136 = vsel %vm1130, %v1117, %v820
      %v1138 = vsel %vm1130, %v1119, %v822
      %v1140 = vsel %vm1130, %v1121, %v824
      %v1142 = vsel %vm1130, %v1123, %v826
      %v1144 = vsel %vm1130, %v1125, %v828
      %v1146 = vsel %vm1130, %v1127, %v830
      %v1148 = vsel %vm1130, %v1129, %v832
      %vm1149 = vcmask 97280
      %v1151 = vsel %vm1149, %v1132, %v879
      %v1153 = vsel %vm1149, %v1134, %v881
      %v1155 = vsel %vm1149, %v1136, %v883
      %v1157 = vsel %vm1149, %v1138, %v885
      %v1159 = vsel %vm1149, %v1140, %v887
      %v1161 = vsel %vm1149, %v1142, %v889
      %v1163 = vsel %vm1149, %v1144, %v891
      %v1165 = vsel %vm1149, %v1146, %v893
      %v1167 = vsel %vm1149, %v1148, %v895
      %vm1168 = vcmask 130048
      %v1170 = vsel %vm1168, %v1151, %v942
      %v1172 = vsel %vm1168, %v1153, %v944
      %v1174 = vsel %vm1168, %v1155, %v946
      %v1176 = vsel %vm1168, %v1157, %v948
      %v1178 = vsel %vm1168, %v1159, %v950
      %v1180 = vsel %vm1168, %v1161, %v952
      %v1182 = vsel %vm1168, %v1163, %v954
      %v1184 = vsel %vm1168, %v1165, %v956
      %v1186 = vsel %vm1168, %v1167, %v958
      %vm1187 = vcmask 162816
      %v1189 = vsel %vm1187, %v1170, %v1023
      %v1191 = vsel %vm1187, %v1172, %v1025
      %v1193 = vsel %vm1187, %v1174, %v1027
      %v1195 = vsel %vm1187, %v1176, %v1029
      %v1197 = vsel %vm1187, %v1178, %v1031
      %v1199 = vsel %vm1187, %v1180, %v1033
      %v1201 = vsel %vm1187, %v1182, %v1035
      %v1203 = vsel %vm1187, %v1184, %v1037
      %v1205 = vsel %vm1187, %v1186, %v1039
      %vm1206 = vcmask 195584
      %v1208 = vsel %vm1206, %v1189, %v1046
      %v1210 = vsel %vm1206, %v1191, %v1048
      %v1212 = vsel %vm1206, %v1193, %v1050
      %v1214 = vsel %vm1206, %v1195, %v1052
      %v1216 = vsel %vm1206, %v1197, %v1054
      %v1218 = vsel %vm1206, %v1199, %v1056
      %v1220 = vsel %vm1206, %v1201, %v1058
      %v1222 = vsel %vm1206, %v1203, %v1060
      %v1224 = vsel %vm1206, %v1205, %v1062
      %vm1225 = vcmask 228352
      %v1227 = vsel %vm1225, %v1208, %v1069
      %v1229 = vsel %vm1225, %v1210, %v1071
      %v1231 = vsel %vm1225, %v1212, %v1073
      %v1233 = vsel %vm1225, %v1214, %v1075
      %v1235 = vsel %vm1225, %v1216, %v1077
      %v1237 = vsel %vm1225, %v1218, %v1079
      %v1239 = vsel %vm1225, %v1220, %v1081
      %v1241 = vsel %vm1225, %v1222, %v1083
      %v1243 = vsel %vm1225, %v1224, %v1085
      %vm1244 = vcmask 261120
      %v1246 = vsel %vm1244, %v1227, %v1094
      %v1249 = vsel %vm1244, %v1229, %v1096
      %v1251 = vsel %vm1244, %v1231, %v1098
      %v1253 = vsel %vm1244, %v1233, %v1100
      %v1255 = vsel %vm1244, %v1235, %v1102
      %v1257 = vsel %vm1244, %v1237, %v1104
      %v1259 = vsel %vm1244, %v1239, %v1106
      %v1261 = vsel %vm1244, %v1241, %v1108
      %v1263 = vsel %vm1244, %v1243, %v1110
      %v1264 = vshrl.u32 %v1249, 16
      %v1266 = vrot.slane %v1264, 3
      %v1267 = vshll.u32 %v1249, 16
      %v1269 = vrot.slane %v1267, 4
      %v1270 = vor.u32 %v1266, %v1269
      %v1273 = vrot.slane %v1251, 7
      %v1274 = vshrl.u32 %v1253, 16
      %v1276 = vrot.slane %v1274, 2
      %v1277 = vshll.u32 %v1253, 16
      %v1279 = vrot.slane %v1277, 3
      %v1280 = vor.u32 %v1276, %v1279
      %v1283 = vrot.slane %v1255, 6
      %v1284 = vshrl.u32 %v1257, 16
      %v1286 = vrot.slane %v1284, 1
      %v1287 = vshll.u32 %v1257, 16
      %v1289 = vrot.slane %v1287, 2
      %v1290 = vor.u32 %v1286, %v1289
      %v1293 = vrot.slane %v1259, 5
      %v1294 = vshll.u32 %v1261, 16
      %v1296 = vrot.slane %v1294, 1
      %v1297 = vshrl.u32 %v1261, 16
      %v1299 = vor.u32 %v1297, %v1296
      %v1302 = vrot.slane %v1263, 4
      %vm1303 = vcmask 1044480
      %vm1304 = vsmask.f32 4352
      %vm1305 = vmand %vm1303, %vm1304
      %v1306 = vsel %vm1305, %v1246, %v1270
      %vm1307 = vcmask 1040384
      %v1310 = vsel %vm1307, %v1270, %v1273
      %vm1312 = vcmask 1045504
      %vm1313 = vsmask.f32 5376
      %vm1314 = vmand %vm1312, %vm1313
      %v1315 = vsel %vm1314, %v1310, %v1280
      %vm1316 = vcmask 1041408
      %v1319 = vsel %vm1316, %v1280, %v1283
      %vm1321 = vcmask 1046528
      %vm1322 = vsmask.f32 6400
      %vm1323 = vmand %vm1321, %vm1322
      %v1324 = vsel %vm1323, %v1319, %v1290
      %vm1325 = vcmask 1042432
      %v1328 = vsel %vm1325, %v1290, %v1293
      %vm1330 = vcmask 1047552
      %vm1331 = vsmask.f32 7424
      %vm1332 = vmand %vm1330, %vm1331
      %v1333 = vsel %vm1332, %v1328, %v1296
      %vm1334 = vcmask 1043456
      %v1337 = vsel %vm1334, %v1299, %v1302
      %v1339 = vperm.slane %v643, 0
      %v1346 = vunpack.c.l.b16 %v638
      %v1347 = vunpack.c.l.b16 %v639
      %v1348 = vunpack.c.l.b16 %v640
      %v1349 = vunpack.c.l.b16 %v641
      %v1350 = vunpack.c.l.b16 %v642
      %v1351 = vpack.c.b16 %v1347, %v1346
      %v1352 = vpack.c.b16 %v1349, %v1348
      %v1353 = vpack.c.b16 %v1350, %v1350
      %vm1356 = vcmask 293888
      %v1358 = vsel %vm1356, %v1306, 0
      %v1361 = vsel %vm1356, %v1315, 0
      %v1364 = vsel %vm1356, %v1324, 0
      %v1367 = vsel %vm1356, %v1333, 0
      %v1369 = vsel %vm1356, %v1337, 0
      %v1371 = vsel %vm1356, %v1302, 0
      %v1374 = vsel %vm1316, %v1353, 0
      %1376 = vmatpush.bf16.msra.mxu0 0
      %1377 = vmatpush.bf16.msra.mxu0 0
      %1378 = vmatpush.bf16.msra.mxu0 0
      %1379 = vmatpush.bf16.msra.mxu0 0
      %1380 = vmatpush.bf16.msra.mxu0 0
      %1381 = vmatpush.bf16.msra.mxu0 %v1374
      %1382 = vmatpush.bf16.msra.mxu0 %v1352
      %1383 = vmatpush.bf16.msra.mxu0 %v1351
      %1384 = vmatmul.bf16.gmra.mxu0 %v1358
      %v1385 = vpop.f32.mrf.mxu0
      %v1386 = vadd.f32 %v1339, %v1385
      %v1387 = vpop.f32.mrf.mxu0
      %v1388 = vadd.f32 %v1339, %v1387
      %1389 = vmatmul.bf16.gmra.mxu0 %v1361
      %v1390 = vpop.f32.mrf.mxu0
      %v1391 = vadd.f32 %v1339, %v1390
      %v1392 = vpop.f32.mrf.mxu0
      %v1393 = vadd.f32 %v1339, %v1392
      %1394 = vmatmul.bf16.gmra.mxu0 %v1364
      %v1395 = vpop.f32.mrf.mxu0
      %v1396 = vadd.f32 %v1339, %v1395
      %v1397 = vpop.f32.mrf.mxu0
      %v1398 = vadd.f32 %v1339, %v1397
      %1399 = vmatmul.bf16.gmra.mxu0 %v1367
      %v1400 = vpop.f32.mrf.mxu0
      %v1401 = vadd.f32 %v1339, %v1400
      %v1402 = vpop.f32.mrf.mxu0
      %v1403 = vadd.f32 %v1339, %v1402
      %1404 = vmatmul.bf16.gmra.mxu0 %v1369
      %v1405 = vpop.f32.mrf.mxu0
      %v1406 = vadd.f32 %v1339, %v1405
      %v1407 = vpop.f32.mrf.mxu0
      %v1408 = vadd.f32 %v1339, %v1407
      %1409 = vmatmul.bf16.gmra.mxu0 %v1371
      %v1410 = vpop.f32.mrf.mxu0
      %v1411 = vadd.f32 %v1339, %v1410
      %v1412 = vpop.f32.mrf.mxu0
      %1413 = vdwg.mxu0
      %v1414 = vmax.f32 %v1386, 0.0
      %v1415 = vmax.f32 %v1388, 0.0
      %v1416 = vmax.f32 %v1391, 0.0
      %v1417 = vmax.f32 %v1393, 0.0
      %v1418 = vmax.f32 %v1396, 0.0
      %v1419 = vmax.f32 %v1398, 0.0
      %v1420 = vmax.f32 %v1401, 0.0
      %v1421 = vmax.f32 %v1403, 0.0
      %v1422 = vmax.f32 %v1406, 0.0
      %v1423 = vmax.f32 %v1408, 0.0
      %v1424 = vmax.f32 %v1411, 0.0
      %v1425 = vpack.c.bf16 %v1414, %v1414
      %v1426 = vpack.c.bf16 %v1415, %v1415
      %v1427 = vpack.c.bf16 %v1416, %v1416
      %v1428 = vpack.c.bf16 %v1417, %v1417
      %v1429 = vpack.c.bf16 %v1418, %v1418
      %v1430 = vpack.c.bf16 %v1419, %v1419
      %v1431 = vpack.c.bf16 %v1420, %v1420
      %v1432 = vpack.c.bf16 %v1421, %v1421
      %v1433 = vpack.c.bf16 %v1422, %v1422
      %v1434 = vpack.c.bf16 %v1423, %v1423
      %v1435 = vpack.c.bf16 %v1424, %v1424
      %vm1436 = vsmask.f32 3328
      %vm1437 = vsmask.f32 7440
      %vm1438 = vmor %vm1436, %vm1437
      %v1440 = vshrl.u32 %v1426, 16
      %v1442 = vrot.slane %v1440, 4
      %v1443 = vshll.u32 %v1426, 16
      %v1445 = vrot.slane %v1443, 5
      %v1446 = vor.u32 %v1442, %v1445
      %v1447 = vrot.slane %v1446, 4
      %v1449 = vshll.u32 %v1427, 16
      %v1451 = vrot.slane %v1449, 5
      %v1452 = vsel %vm1438, %v1447, %v1451
      %v1453 = vshrl.u32 %v1427, 16
      %v1455 = vrot.slane %v1453, 4
      %v1456 = vrot.slane %v1455, 4
      %vm1459 = vcmask 1042432
      %vm1460 = vcmask 1046532
      %vm1461 = vmor %vm1459, %vm1460
      %v1462 = vrot.slane %v1427, 5
      %v1463 = vrot.slane %v1462, 4
      %v1464 = vrot.slane %v1428, 5
      %v1465 = vsel %vm1461, %v1463, %v1464
      %v1466 = vrot.slane %v1464, 4
      %vm1467 = vsmask.f32 2304
      %vm1468 = vsmask.f32 6416
      %vm1469 = vmor %vm1467, %vm1468
      %v1471 = vshrl.u32 %v1428, 16
      %v1473 = vrot.slane %v1471, 5
      %v1474 = vshll.u32 %v1428, 16
      %v1476 = vrot.slane %v1474, 6
      %v1477 = vor.u32 %v1473, %v1476
      %v1478 = vrot.slane %v1477, 4
      %v1480 = vshrl.u32 %v1429, 16
      %v1482 = vrot.slane %v1480, 5
      %v1483 = vshll.u32 %v1429, 16
      %v1485 = vrot.slane %v1483, 6
      %v1486 = vor.u32 %v1482, %v1485
      %v1487 = vsel %vm1469, %v1478, %v1486
      %v1488 = vrot.slane %v1482, 4
      %vm1491 = vcmask 1041408
      %vm1492 = vcmask 1045508
      %vm1493 = vmor %vm1491, %vm1492
      %v1494 = vrot.slane %v1429, 6
      %v1495 = vrot.slane %v1494, 4
      %v1496 = vrot.slane %v1430, 6
      %v1497 = vsel %vm1493, %v1495, %v1496
      %v1498 = vrot.slane %v1496, 4
      %vm1499 = vsmask.f32 1280
      %vm1500 = vsmask.f32 5392
      %vm1501 = vmor %vm1499, %vm1500
      %v1503 = vshrl.u32 %v1430, 16
      %v1505 = vrot.slane %v1503, 6
      %v1506 = vshll.u32 %v1430, 16
      %v1508 = vrot.slane %v1506, 7
      %v1509 = vor.u32 %v1505, %v1508
      %v1510 = vrot.slane %v1509, 4
      %v1512 = vshrl.u32 %v1431, 16
      %v1514 = vrot.slane %v1512, 6
      %v1515 = vshll.u32 %v1431, 16
      %v1517 = vrot.slane %v1515, 7
      %v1518 = vor.u32 %v1514, %v1517
      %v1519 = vsel %vm1501, %v1510, %v1518
      %v1520 = vrot.slane %v1514, 4
      %vm1523 = vcmask 1040384
      %vm1524 = vcmask 1044484
      %vm1525 = vmor %vm1523, %vm1524
      %v1526 = vrot.slane %v1431, 7
      %v1527 = vrot.slane %v1526, 4
      %v1528 = vrot.slane %v1432, 7
      %v1529 = vsel %vm1525, %v1527, %v1528
      %v1530 = vrot.slane %v1528, 4
      %vm1531 = vsmask.f32 256
      %vm1532 = vsmask.f32 4368
      %vm1533 = vmor %vm1531, %vm1532
      %v1535 = vshrl.u32 %v1432, 16
      %v1537 = vrot.slane %v1535, 7
      %v1538 = vrot.slane %v1537, 4
      %v1540 = vshrl.u32 %v1433, 16
      %v1542 = vrot.slane %v1540, 7
      %v1543 = vshll.u32 %v1433, 16
      %v1545 = vor.u32 %v1542, %v1543
      %v1546 = vsel %vm1533, %v1538, %v1545
      %v1547 = vrot.slane %v1542, 4
      %v1548 = vld [vmem:[%s3] sm:$0xf]
      %v1549 = vld [vmem:[%s3 + $0x4] sm:$0xf]
      %v1550 = vld [vmem:[%s3 + $0x8] sm:$0xf]
      %v1551 = vld [vmem:[%s3 + $0xc] sm:$0xf]
      %v1552 = vld [vmem:[%s3 + $0x10] sm:$0xf]
      %v1553 = vld [vmem:[%s3 + $0x14] sm:$0xf]
      %v1554 = vld [vmem:[%s3 + $0x18] sm:$0xf]
      %v1555 = vld [vmem:[%s3 + $0x1c] sm:$0xf]
      %v1556 = vld [vmem:[%s3 + $0x20] sm:$0xf]
      %v1557 = vld [vmem:[%s3 + $0x24] sm:$0xf]
      %v1558 = vld [vmem:[%s3 + $0x28] sm:$0xf]
      %v1559 = vld [vmem:[%s3 + $0x2c] sm:$0xf]
      %v1560 = vld [vmem:[%s3 + $0x30] sm:$0xf]
      %v1561 = vld [vmem:[%s3 + $0x34] sm:$0xf]
      %v1562 = vld [vmem:[%s3 + $0x38] sm:$0xf]
      %v1563 = vld [vmem:[%s3 + $0x3c] sm:$0xf]
      %v1564 = vld [vmem:[%s3 + $0x40] sm:$0xf]
      %v1565 = vld [vmem:[%s3 + $0x44] sm:$0xf]
      %v1566 = vld [vmem:[%s3 + $0x48] sm:$0xf]
      %v1567 = vld [vmem:[%s3 + $0x4c] sm:$0xf]
      %v1568 = vld [vmem:[%s3 + $0x50] sm:$0xf]
      %v1569 = vld [vmem:[%s3 + $0x54] sm:$0xf]
      %v1570 = vld [vmem:[%s3 + $0x58] sm:$0xf]
      %v1571 = vld [vmem:[%s3 + $0x5c] sm:$0xf]
      %v1572 = vld [vmem:[%s3 + $0x60] sm:$0xf]
      %v1573 = vld [vmem:[%s3 + $0x64] sm:$0xf]
      %v1574 = vld [vmem:[%s3 + $0x68] sm:$0xf]
      %v1575 = vld [vmem:[%s3 + $0x6c] sm:$0xf]
      %v1576 = vld [vmem:[%s3 + $0x70] sm:$0xf]
      %v1577 = vld [vmem:[%s3 + $0x74] sm:$0xf]
      %v1578 = vld [vmem:[%s3 + $0x78] sm:$0xf]
      %v1579 = vld [vmem:[%s3 + $0x7c] sm:$0xf]
      %v1580 = vld [vmem:[%s3 + $0x80] sm:$0xf]
      %v1581 = vld [vmem:[%s3 + $0x84] sm:$0xf]
      %v1582 = vld [vmem:[%s3 + $0x88] sm:$0xf]
      %v1583 = vld [vmem:[%s3 + $0x8c] sm:$0xf]
      %v1584 = vld [vmem:[%s4] sm:$0x1]
      %v1586 = vunpack.c.l.b16 %v1425
      %v1587 = vunpack.c.l.b16 %v1452
      %v1588 = vunpack.c.l.b16 %v1465
      %v1589 = vunpack.c.l.b16 %v1487
      %v1590 = vunpack.c.l.b16 %v1497
      %v1591 = vunpack.c.l.b16 %v1519
      %v1592 = vunpack.c.l.b16 %v1529
      %v1593 = vpack.c.b16 %v1586, %v1586
      %v1594 = vpack.c.b16 %v1587, %v1587
      %v1595 = vpack.c.b16 %v1588, %v1588
      %v1596 = vpack.c.b16 %v1589, %v1589
      %v1597 = vpack.c.b16 %v1590, %v1590
      %v1598 = vpack.c.b16 %v1591, %v1591
      %v1599 = vpack.c.b16 %v1592, %v1592
      %v1601 = vshrl.u32 %v1593, 16
      %v1603 = vshll.u32 %v1593, 16
      %v1605 = vrot.slane %v1603, 1
      %v1606 = vor.u32 %v1601, %v1605
      %v1608 = vshrl.u32 %v1594, 16
      %v1610 = vshll.u32 %v1594, 16
      %v1612 = vrot.slane %v1610, 1
      %v1613 = vor.u32 %v1608, %v1612
      %v1615 = vshrl.u32 %v1595, 16
      %v1617 = vshll.u32 %v1595, 16
      %v1619 = vrot.slane %v1617, 1
      %v1620 = vor.u32 %v1615, %v1619
      %v1622 = vshrl.u32 %v1596, 16
      %v1624 = vshll.u32 %v1596, 16
      %v1626 = vrot.slane %v1624, 1
      %v1627 = vor.u32 %v1622, %v1626
      %v1629 = vshrl.u32 %v1597, 16
      %v1631 = vshll.u32 %v1597, 16
      %v1633 = vrot.slane %v1631, 1
      %v1634 = vor.u32 %v1629, %v1633
      %v1636 = vshrl.u32 %v1598, 16
      %v1638 = vshll.u32 %v1598, 16
      %v1640 = vrot.slane %v1638, 1
      %v1641 = vor.u32 %v1636, %v1640
      %v1643 = vshrl.u32 %v1599, 16
      %v1645 = vshll.u32 %v1599, 16
      %v1647 = vrot.slane %v1645, 1
      %v1648 = vor.u32 %v1643, %v1647
      %1649 = vrot.lane.b32.xlu0 %v1606, 32
      %v1650 = vpop.permute.xlu0 %1649
      %1651 = vrot.lane.b32.xlu0 %v1613, 32
      %v1652 = vpop.permute.xlu0 %1651
      %1653 = vrot.lane.b32.xlu0 %v1620, 32
      %v1654 = vpop.permute.xlu0 %1653
      %1655 = vrot.lane.b32.xlu0 %v1627, 32
      %v1656 = vpop.permute.xlu0 %1655
      %1657 = vrot.lane.b32.xlu0 %v1634, 32
      %v1658 = vpop.permute.xlu0 %1657
      %1659 = vrot.lane.b32.xlu0 %v1641, 32
      %v1660 = vpop.permute.xlu0 %1659
      %1661 = vrot.lane.b32.xlu0 %v1648, 32
      %v1662 = vpop.permute.xlu0 %1661
      %v1664 = vunpack.c.l.b16 %v1426
      %v1665 = vunpack.c.l.b16 %v1456
      %v1666 = vunpack.c.l.b16 %v1466
      %v1667 = vunpack.c.l.b16 %v1488
      %v1668 = vunpack.c.l.b16 %v1498
      %v1669 = vunpack.c.l.b16 %v1520
      %v1670 = vunpack.c.l.b16 %v1530
      %v1671 = vpack.c.b16 %v1664, %v1586
      %v1672 = vpack.c.b16 %v1665, %v1587
      %v1673 = vpack.c.b16 %v1666, %v1588
      %v1674 = vpack.c.b16 %v1667, %v1589
      %v1675 = vpack.c.b16 %v1668, %v1590
      %v1676 = vpack.c.b16 %v1669, %v1591
      %v1677 = vpack.c.b16 %v1670, %v1592
      %v1678 = vrot.slane %v1671, 1
      %v1679 = vrot.slane %v1672, 1
      %v1680 = vrot.slane %v1673, 1
      %v1681 = vrot.slane %v1674, 1
      %v1682 = vrot.slane %v1675, 1
      %v1683 = vrot.slane %v1676, 1
      %v1684 = vrot.slane %v1677, 1
      %1685 = vrot.lane.b32.xlu0 %v1678, 64
      %v1686 = vpop.permute.xlu0 %1685
      %1687 = vrot.lane.b32.xlu0 %v1679, 64
      %v1688 = vpop.permute.xlu0 %1687
      %1689 = vrot.lane.b32.xlu0 %v1680, 64
      %v1690 = vpop.permute.xlu0 %1689
      %1691 = vrot.lane.b32.xlu0 %v1681, 64
      %v1692 = vpop.permute.xlu0 %1691
      %1693 = vrot.lane.b32.xlu0 %v1682, 64
      %v1694 = vpop.permute.xlu0 %1693
      %1695 = vrot.lane.b32.xlu0 %v1683, 64
      %v1696 = vpop.permute.xlu0 %1695
      %1697 = vrot.lane.b32.xlu0 %v1684, 64
      %v1698 = vpop.permute.xlu0 %1697
      %v1699 = vunpack.c.l.b16 %v1546
      %v1700 = vpack.c.b16 %v1699, %v1699
      %1701 = vrot.lane.b32.xlu0 %v1594, 96
      %v1702 = vpop.permute.xlu0 %1701
      %1703 = vrot.lane.b32.xlu0 %v1595, 96
      %v1704 = vpop.permute.xlu0 %1703
      %1705 = vrot.lane.b32.xlu0 %v1596, 96
      %v1706 = vpop.permute.xlu0 %1705
      %1707 = vrot.lane.b32.xlu0 %v1597, 96
      %v1708 = vpop.permute.xlu0 %1707
      %1709 = vrot.lane.b32.xlu0 %v1598, 96
      %v1710 = vpop.permute.xlu0 %1709
      %1711 = vrot.lane.b32.xlu0 %v1599, 96
      %v1712 = vpop.permute.xlu0 %1711
      %1713 = vrot.lane.b32.xlu0 %v1700, 96
      %v1714 = vpop.permute.xlu0 %1713
      %v1716 = vshrl.u32 %v1700, 16
      %v1718 = vshll.u32 %v1700, 16
      %v1720 = vrot.slane %v1718, 1
      %v1721 = vor.u32 %v1716, %v1720
      %v1722 = vunpack.c.l.b16 %v1547
      %v1723 = vpack.c.b16 %v1722, %v1699
      %v1724 = vrot.slane %v1723, 1
      %1725 = vrot.lane.b32.xlu0 %v1679, 32
      %v1726 = vpop.permute.xlu0 %1725
      %1727 = vrot.lane.b32.xlu0 %v1680, 32
      %v1728 = vpop.permute.xlu0 %1727
      %1729 = vrot.lane.b32.xlu0 %v1681, 32
      %v1730 = vpop.permute.xlu0 %1729
      %1731 = vrot.lane.b32.xlu0 %v1682, 32
      %v1732 = vpop.permute.xlu0 %1731
      %1733 = vrot.lane.b32.xlu0 %v1683, 32
      %v1734 = vpop.permute.xlu0 %1733
      %1735 = vrot.lane.b32.xlu0 %v1684, 32
      %v1736 = vpop.permute.xlu0 %1735
      %1737 = vrot.lane.b32.xlu0 %v1724, 32
      %v1738 = vpop.permute.xlu0 %1737
      %v1740 = vunpack.c.l.b16 %v1434
      %v1741 = vpack.c.b16 %v1740, %v1740
      %1742 = vrot.lane.b32.xlu0 %v1595, 64
      %v1743 = vpop.permute.xlu0 %1742
      %1744 = vrot.lane.b32.xlu0 %v1596, 64
      %v1745 = vpop.permute.xlu0 %1744
      %1746 = vrot.lane.b32.xlu0 %v1597, 64
      %v1747 = vpop.permute.xlu0 %1746
      %1748 = vrot.lane.b32.xlu0 %v1598, 64
      %v1749 = vpop.permute.xlu0 %1748
      %1750 = vrot.lane.b32.xlu0 %v1599, 64
      %v1751 = vpop.permute.xlu0 %1750
      %1752 = vrot.lane.b32.xlu0 %v1700, 64
      %v1753 = vpop.permute.xlu0 %1752
      %1754 = vrot.lane.b32.xlu0 %v1741, 64
      %v1755 = vpop.permute.xlu0 %1754
      %v1757 = vshrl.u32 %v1741, 16
      %v1759 = vshll.u32 %v1741, 16
      %v1761 = vrot.slane %v1759, 1
      %v1762 = vor.u32 %v1757, %v1761
      %1763 = vrot.lane.b32.xlu0 %v1620, 96
      %v1764 = vpop.permute.xlu0 %1763
      %1765 = vrot.lane.b32.xlu0 %v1627, 96
      %v1766 = vpop.permute.xlu0 %1765
      %1767 = vrot.lane.b32.xlu0 %v1634, 96
      %v1768 = vpop.permute.xlu0 %1767
      %1769 = vrot.lane.b32.xlu0 %v1641, 96
      %v1770 = vpop.permute.xlu0 %1769
      %1771 = vrot.lane.b32.xlu0 %v1648, 96
      %v1772 = vpop.permute.xlu0 %1771
      %1773 = vrot.lane.b32.xlu0 %v1721, 96
      %v1774 = vpop.permute.xlu0 %1773
      %1775 = vrot.lane.b32.xlu0 %v1762, 96
      %v1776 = vpop.permute.xlu0 %1775
      %v1778 = vunpack.c.l.b16 %v1435
      %v1779 = vpack.c.b16 %v1778, %v1740
      %v1780 = vrot.slane %v1779, 1
      %v1784 = vsel %vm1244, %v1425, %v1650
      %v1787 = vsel %vm1244, %v1452, %v1652
      %v1790 = vsel %vm1244, %v1465, %v1654
      %v1793 = vsel %vm1244, %v1487, %v1656
      %v1796 = vsel %vm1244, %v1497, %v1658
      %v1799 = vsel %vm1244, %v1519, %v1660
      %v1802 = vsel %vm1244, %v1529, %v1662
      %vm1803 = vcmask 523264
      %v1805 = vsel %vm1803, %v1784, %v1686
      %v1807 = vsel %vm1803, %v1787, %v1688
      %v1809 = vsel %vm1803, %v1790, %v1690
      %v1811 = vsel %vm1803, %v1793, %v1692
      %v1813 = vsel %vm1803, %v1796, %v1694
      %v1815 = vsel %vm1803, %v1799, %v1696
      %v1817 = vsel %vm1803, %v1802, %v1698
      %vm1818 = vcmask 785408
      %v1820 = vsel %vm1818, %v1805, %v1702
      %v1823 = vsel %vm1818, %v1807, %v1704
      %v1825 = vsel %vm1818, %v1809, %v1706
      %v1827 = vsel %vm1818, %v1811, %v1708
      %v1829 = vsel %vm1818, %v1813, %v1710
      %v1831 = vsel %vm1818, %v1815, %v1712
      %v1833 = vsel %vm1818, %v1817, %v1714
      %v1836 = vsel %vm1244, %v1613, %v1726
      %v1839 = vsel %vm1244, %v1620, %v1728
      %v1842 = vsel %vm1244, %v1627, %v1730
      %v1845 = vsel %vm1244, %v1634, %v1732
      %v1848 = vsel %vm1244, %v1641, %v1734
      %v1851 = vsel %vm1244, %v1648, %v1736
      %v1854 = vsel %vm1244, %v1721, %v1738
      %v1856 = vsel %vm1803, %v1836, %v1743
      %v1858 = vsel %vm1803, %v1839, %v1745
      %v1860 = vsel %vm1803, %v1842, %v1747
      %v1862 = vsel %vm1803, %v1845, %v1749
      %v1864 = vsel %vm1803, %v1848, %v1751
      %v1866 = vsel %vm1803, %v1851, %v1753
      %v1868 = vsel %vm1803, %v1854, %v1755
      %v1870 = vsel %vm1818, %v1856, %v1764
      %v1873 = vsel %vm1818, %v1858, %v1766
      %v1875 = vsel %vm1818, %v1860, %v1768
      %v1877 = vsel %vm1818, %v1862, %v1770
      %v1879 = vsel %vm1818, %v1864, %v1772
      %v1881 = vsel %vm1818, %v1866, %v1774
      %v1883 = vsel %vm1818, %v1868, %v1776
      %v1884 = vshrl.u32 %v1823, 16
      %v1886 = vrot.slane %v1884, 4
      %v1887 = vshll.u32 %v1823, 16
      %v1889 = vrot.slane %v1887, 5
      %v1890 = vor.u32 %v1886, %v1889
      %v1891 = vshrl.u32 %v1873, 16
      %v1893 = vrot.slane %v1891, 4
      %v1894 = vshll.u32 %v1873, 16
      %v1896 = vrot.slane %v1894, 5
      %v1897 = vor.u32 %v1893, %v1896
      %v1899 = vshrl.u32 %v1681, 16
      %v1901 = vrot.slane %v1899, 4
      %v1902 = vshll.u32 %v1681, 16
      %v1904 = vrot.slane %v1902, 5
      %v1905 = vor.u32 %v1901, %v1904
      %v1911 = vrot.slane %v1825, 1
      %v1912 = vrot.slane %v1875, 1
      %v1913 = vrot.slane %v1682, 1
      %v1917 = vshrl.u32 %v1827, 16
      %v1919 = vrot.slane %v1917, 5
      %v1920 = vshll.u32 %v1827, 16
      %v1922 = vrot.slane %v1920, 6
      %v1923 = vor.u32 %v1919, %v1922
      %v1924 = vshrl.u32 %v1877, 16
      %v1926 = vrot.slane %v1924, 5
      %v1927 = vshll.u32 %v1877, 16
      %v1929 = vrot.slane %v1927, 6
      %v1930 = vor.u32 %v1926, %v1929
      %v1932 = vshrl.u32 %v1683, 16
      %v1934 = vrot.slane %v1932, 5
      %v1935 = vshll.u32 %v1683, 16
      %v1937 = vrot.slane %v1935, 6
      %v1938 = vor.u32 %v1934, %v1937
      %v1944 = vrot.slane %v1829, 2
      %v1945 = vrot.slane %v1879, 2
      %v1946 = vrot.slane %v1684, 2
      %v1950 = vshrl.u32 %v1831, 16
      %v1952 = vrot.slane %v1950, 6
      %v1953 = vshll.u32 %v1831, 16
      %v1955 = vrot.slane %v1953, 7
      %v1956 = vor.u32 %v1952, %v1955
      %v1957 = vshrl.u32 %v1881, 16
      %v1959 = vrot.slane %v1957, 6
      %v1960 = vshll.u32 %v1881, 16
      %v1962 = vrot.slane %v1960, 7
      %v1963 = vor.u32 %v1959, %v1962
      %v1965 = vshrl.u32 %v1724, 16
      %v1967 = vrot.slane %v1965, 6
      %v1968 = vshll.u32 %v1724, 16
      %v1970 = vrot.slane %v1968, 7
      %v1971 = vor.u32 %v1967, %v1970
      %v1977 = vrot.slane %v1833, 3
      %v1978 = vrot.slane %v1883, 3
      %v1979 = vrot.slane %v1780, 3
      %vm1982 = vcmask 1043456
      %vm1983 = vmand %vm1982, %vm1436
      %v1984 = vsel %vm1983, %v1820, %v1890
      %v1985 = vsel %vm1983, %v1870, %v1897
      %v1986 = vsel %vm1983, %v1680, %v1905
      %vm1987 = vcmask 1046528
      %v1990 = vsel %vm1987, %v1984, %v1911
      %v1994 = vsel %vm1987, %v1985, %v1912
      %v1998 = vsel %vm1987, %v1986, %v1913
      %vm1999 = vmand %vm1459, %vm1467
      %v2000 = vsel %vm1999, %v1911, %v1923
      %v2001 = vsel %vm1999, %v1912, %v1930
      %v2002 = vsel %vm1999, %v1913, %v1938
      %vm2003 = vcmask 1045504
      %v2006 = vsel %vm2003, %v2000, %v1944
      %v2010 = vsel %vm2003, %v2001, %v1945
      %v2014 = vsel %vm2003, %v2002, %v1946
      %vm2015 = vmand %vm1491, %vm1499
      %v2016 = vsel %vm2015, %v1944, %v1956
      %v2017 = vsel %vm2015, %v1945, %v1963
      %v2018 = vsel %vm2015, %v1946, %v1971
      %vm2019 = vcmask 1044480
      %v2022 = vsel %vm2019, %v2016, %v1977
      %v2026 = vsel %vm2019, %v2017, %v1978
      %v2030 = vsel %vm2019, %v2018, %v1979
      %v2032 = vperm.slane %v1584, 0
      %v2070 = vunpack.c.l.b16 %v1548
      %v2071 = vunpack.c.l.b16 %v1549
      %v2072 = vunpack.c.l.b16 %v1550
      %v2073 = vunpack.c.l.b16 %v1551
      %v2074 = vunpack.c.l.b16 %v1552
      %v2075 = vunpack.c.l.b16 %v1553
      %v2076 = vunpack.c.l.b16 %v1554
      %v2077 = vunpack.c.l.b16 %v1555
      %v2078 = vunpack.c.l.b16 %v1556
      %v2079 = vunpack.c.l.b16 %v1557
      %v2080 = vunpack.c.l.b16 %v1558
      %v2081 = vunpack.c.l.b16 %v1559
      %v2082 = vunpack.c.l.b16 %v1560
      %v2083 = vunpack.c.l.b16 %v1561
      %v2084 = vunpack.c.l.b16 %v1562
      %v2085 = vunpack.c.l.b16 %v1563
      %v2086 = vunpack.c.l.b16 %v1564
      %v2087 = vunpack.c.l.b16 %v1565
      %v2088 = vunpack.c.l.b16 %v1566
      %v2089 = vunpack.c.l.b16 %v1567
      %v2090 = vunpack.c.l.b16 %v1568
      %v2091 = vunpack.c.l.b16 %v1569
      %v2092 = vunpack.c.l.b16 %v1570
      %v2093 = vunpack.c.l.b16 %v1571
      %v2094 = vunpack.c.l.b16 %v1572
      %v2095 = vunpack.c.l.b16 %v1573
      %v2096 = vunpack.c.l.b16 %v1574
      %v2097 = vunpack.c.l.b16 %v1575
      %v2098 = vunpack.c.l.b16 %v1576
      %v2099 = vunpack.c.l.b16 %v1577
      %v2100 = vunpack.c.l.b16 %v1578
      %v2101 = vunpack.c.l.b16 %v1579
      %v2102 = vunpack.c.l.b16 %v1580
      %v2103 = vunpack.c.l.b16 %v1581
      %v2104 = vunpack.c.l.b16 %v1582
      %v2105 = vunpack.c.l.b16 %v1583
      %v2106 = vpack.c.b16 %v2071, %v2070
      %v2107 = vpack.c.b16 %v2073, %v2072
      %v2108 = vpack.c.b16 %v2075, %v2074
      %v2109 = vpack.c.b16 %v2077, %v2076
      %v2110 = vpack.c.b16 %v2079, %v2078
      %v2111 = vpack.c.b16 %v2081, %v2080
      %v2112 = vpack.c.b16 %v2083, %v2082
      %v2113 = vpack.c.b16 %v2085, %v2084
      %v2114 = vpack.c.b16 %v2087, %v2086
      %v2115 = vpack.c.b16 %v2089, %v2088
      %v2116 = vpack.c.b16 %v2091, %v2090
      %v2117 = vpack.c.b16 %v2093, %v2092
      %v2118 = vpack.c.b16 %v2095, %v2094
      %v2119 = vpack.c.b16 %v2097, %v2096
      %v2120 = vpack.c.b16 %v2099, %v2098
      %v2121 = vpack.c.b16 %v2101, %v2100
      %v2122 = vpack.c.b16 %v2103, %v2102
      %v2123 = vpack.c.b16 %v2105, %v2104
      %v2142 = vsel %vm1244, %v1998, 0
      %v2144 = vsel %vm1244, %v2014, 0
      %v2146 = vsel %vm1244, %v2030, 0
      %v2148 = vsel %vm1244, %v1979, 0
      %2150 = vmatpush.bf16.msra.mxu0 %v2113
      %2151 = vmatpush.bf16.msra.mxu0 %v2112
      %2152 = vmatpush.bf16.msra.mxu0 %v2111
      %2153 = vmatpush.bf16.msra.mxu0 %v2110
      %2154 = vmatpush.bf16.msra.mxu0 %v2109
      %2155 = vmatpush.bf16.msra.mxu0 %v2108
      %2156 = vmatpush.bf16.msra.mxu0 %v2107
      %2157 = vmatpush.bf16.msra.mxu0 %v2106
      %2158 = vmatmul.bf16.gmra.mxu0 %v1990
      %v2159 = vpop.f32.mrf.mxu0
      %v2160 = vadd.f32 %v2032, %v2159
      %v2161 = vpop.f32.mrf.mxu0
      %v2162 = vadd.f32 %v2032, %v2161
      %2163 = vmatmul.bf16.gmra.mxu0 %v2006
      %v2164 = vpop.f32.mrf.mxu0
      %v2165 = vadd.f32 %v2032, %v2164
      %v2166 = vpop.f32.mrf.mxu0
      %v2167 = vadd.f32 %v2032, %v2166
      %2168 = vmatmul.bf16.gmra.mxu0 %v2022
      %v2169 = vpop.f32.mrf.mxu0
      %v2170 = vadd.f32 %v2032, %v2169
      %v2171 = vpop.f32.mrf.mxu0
      %v2172 = vadd.f32 %v2032, %v2171
      %2173 = vmatmul.bf16.gmra.mxu0 %v1977
      %v2174 = vpop.f32.mrf.mxu0
      %v2175 = vadd.f32 %v2032, %v2174
      %v2176 = vpop.f32.mrf.mxu0
      %2177 = vdwg.mxu0
      %2178 = vmatpush.bf16.msra.mxu0 %v2121
      %2179 = vmatpush.bf16.msra.mxu0 %v2120
      %2180 = vmatpush.bf16.msra.mxu0 %v2119
      %2181 = vmatpush.bf16.msra.mxu0 %v2118
      %2182 = vmatpush.bf16.msra.mxu0 %v2117
      %2183 = vmatpush.bf16.msra.mxu0 %v2116
      %2184 = vmatpush.bf16.msra.mxu0 %v2115
      %2185 = vmatpush.bf16.msra.mxu0 %v2114
      %2186 = vmatmul.bf16.gmra.mxu0 %v1994
      %v2187 = vpop.f32.mrf.mxu0
      %v2188 = vadd.f32 %v2160, %v2187
      %v2189 = vpop.f32.mrf.mxu0
      %v2190 = vadd.f32 %v2162, %v2189
      %2191 = vmatmul.bf16.gmra.mxu0 %v2010
      %v2192 = vpop.f32.mrf.mxu0
      %v2193 = vadd.f32 %v2165, %v2192
      %v2194 = vpop.f32.mrf.mxu0
      %v2195 = vadd.f32 %v2167, %v2194
      %2196 = vmatmul.bf16.gmra.mxu0 %v2026
      %v2197 = vpop.f32.mrf.mxu0
      %v2198 = vadd.f32 %v2170, %v2197
      %v2199 = vpop.f32.mrf.mxu0
      %v2200 = vadd.f32 %v2172, %v2199
      %2201 = vmatmul.bf16.gmra.mxu0 %v1978
      %v2202 = vpop.f32.mrf.mxu0
      %v2203 = vadd.f32 %v2175, %v2202
      %v2204 = vpop.f32.mrf.mxu0
      %2205 = vdwg.mxu0
      %2206 = vmatpush.bf16.msra.mxu0 0
      %2207 = vmatpush.bf16.msra.mxu0 0
      %2208 = vmatpush.bf16.msra.mxu0 0
      %2209 = vmatpush.bf16.msra.mxu0 0
      %2210 = vmatpush.bf16.msra.mxu0 0
      %2211 = vmatpush.bf16.msra.mxu0 0
      %2212 = vmatpush.bf16.msra.mxu0 %v2123
      %2213 = vmatpush.bf16.msra.mxu0 %v2122
      %2214 = vmatmul.bf16.gmra.mxu0 %v2142
      %v2215 = vpop.f32.mrf.mxu0
      %v2216 = vadd.f32 %v2188, %v2215
      %v2217 = vpop.f32.mrf.mxu0
      %v2218 = vadd.f32 %v2190, %v2217
      %2219 = vmatmul.bf16.gmra.mxu0 %v2144
      %v2220 = vpop.f32.mrf.mxu0
      %v2221 = vadd.f32 %v2193, %v2220
      %v2222 = vpop.f32.mrf.mxu0
      %v2223 = vadd.f32 %v2195, %v2222
      %2224 = vmatmul.bf16.gmra.mxu0 %v2146
      %v2225 = vpop.f32.mrf.mxu0
      %v2226 = vadd.f32 %v2198, %v2225
      %v2227 = vpop.f32.mrf.mxu0
      %v2228 = vadd.f32 %v2200, %v2227
      %2229 = vmatmul.bf16.gmra.mxu0 %v2148
      %v2230 = vpop.f32.mrf.mxu0
      %v2231 = vadd.f32 %v2203, %v2230
      %v2232 = vpop.f32.mrf.mxu0
      %2233 = vdwg.mxu0
      %v2234 = vmax.f32 %v2216, 0.0
      %v2235 = vmax.f32 %v2218, 0.0
      %v2236 = vmax.f32 %v2221, 0.0
      %v2237 = vmax.f32 %v2223, 0.0
      %v2238 = vmax.f32 %v2226, 0.0
      %v2239 = vmax.f32 %v2228, 0.0
      %v2240 = vmax.f32 %v2231, 0.0
      %v2241 = vpack.c.bf16 %v2234, %v2234
      %v2242 = vpack.c.bf16 %v2235, %v2235
      %v2243 = vpack.c.bf16 %v2236, %v2236
      %v2244 = vpack.c.bf16 %v2237, %v2237
      %v2245 = vpack.c.bf16 %v2238, %v2238
      %v2246 = vpack.c.bf16 %v2239, %v2239
      %v2247 = vpack.c.bf16 %v2240, %v2240
      %v2249 = vshrl.u32 %v2241, 16
      %v2251 = vrot.slane %v2249, 7
      %v2252 = vrot.slane %v2251, 4
      %v2254 = vshrl.u32 %v2242, 16
      %v2256 = vrot.slane %v2254, 7
      %v2257 = vshll.u32 %v2242, 16
      %v2259 = vor.u32 %v2256, %v2257
      %v2260 = vsel %vm1533, %v2252, %v2259
      %v2263 = vrot.slane %v2242, 7
      %v2264 = vrot.slane %v2263, 4
      %v2265 = vrot.slane %v2243, 7
      %v2266 = vsel %vm1525, %v2264, %v2265
      %v2268 = vshrl.u32 %v2243, 16
      %v2270 = vrot.slane %v2268, 6
      %v2271 = vshll.u32 %v2243, 16
      %v2273 = vrot.slane %v2271, 7
      %v2274 = vor.u32 %v2270, %v2273
      %v2275 = vrot.slane %v2274, 4
      %v2277 = vshrl.u32 %v2244, 16
      %v2279 = vrot.slane %v2277, 6
      %v2280 = vshll.u32 %v2244, 16
      %v2282 = vrot.slane %v2280, 7
      %v2283 = vor.u32 %v2279, %v2282
      %v2284 = vsel %vm1501, %v2275, %v2283
      %v2287 = vrot.slane %v2244, 6
      %v2288 = vrot.slane %v2287, 4
      %v2289 = vrot.slane %v2245, 6
      %v2290 = vsel %vm1493, %v2288, %v2289
      %v2292 = vshrl.u32 %v2245, 16
      %v2294 = vrot.slane %v2292, 5
      %v2295 = vshll.u32 %v2245, 16
      %v2297 = vrot.slane %v2295, 6
      %v2298 = vor.u32 %v2294, %v2297
      %v2299 = vrot.slane %v2298, 4
      %v2301 = vshrl.u32 %v2246, 16
      %v2303 = vrot.slane %v2301, 5
      %v2304 = vshll.u32 %v2246, 16
      %v2306 = vrot.slane %v2304, 6
      %v2307 = vor.u32 %v2303, %v2306
      %v2308 = vsel %vm1469, %v2299, %v2307
      %v2311 = vrot.slane %v2246, 5
      %v2312 = vrot.slane %v2311, 4
      %v2313 = vrot.slane %v2247, 5
      %v2314 = vsel %vm1461, %v2312, %v2313
      %v2315 = vld [vmem:[%s5] sm:$0xf]
      %v2316 = vld [vmem:[%s5 + $0x4] sm:$0xf]
      %v2317 = vld [vmem:[%s5 + $0x8] sm:$0xf]
      %v2318 = vld [vmem:[%s5 + $0xc] sm:$0xf]
      %v2319 = vld [vmem:[%s5 + $0x10] sm:$0xf]
      %v2320 = vld [vmem:[%s5 + $0x14] sm:$0xf]
      %v2321 = vld [vmem:[%s5 + $0x18] sm:$0xf]
      %v2322 = vld [vmem:[%s5 + $0x1c] sm:$0xf]
      %v2323 = vld [vmem:[%s5 + $0x20] sm:$0xf]
      %v2324 = vld [vmem:[%s5 + $0x24] sm:$0xf]
      %v2325 = vld [vmem:[%s5 + $0x28] sm:$0xf]
      %v2326 = vld [vmem:[%s5 + $0x2c] sm:$0xf]
      %v2327 = vld [vmem:[%s5 + $0x30] sm:$0xf]
      %v2328 = vld [vmem:[%s5 + $0x34] sm:$0xf]
      %v2329 = vld [vmem:[%s5 + $0x38] sm:$0xf]
      %v2330 = vld [vmem:[%s5 + $0x3c] sm:$0xf]
      %v2331 = vld [vmem:[%s5 + $0x40] sm:$0xf]
      %v2332 = vld [vmem:[%s5 + $0x44] sm:$0xf]
      %v2333 = vld [vmem:[%s5 + $0x48] sm:$0xf]
      %v2334 = vld [vmem:[%s5 + $0x4c] sm:$0xf]
      %v2335 = vld [vmem:[%s5 + $0x50] sm:$0xf]
      %v2336 = vld [vmem:[%s5 + $0x54] sm:$0xf]
      %v2337 = vld [vmem:[%s5 + $0x58] sm:$0xf]
      %v2338 = vld [vmem:[%s5 + $0x5c] sm:$0xf]
      %v2339 = vld [vmem:[%s5 + $0x60] sm:$0xf]
      %v2340 = vld [vmem:[%s5 + $0x64] sm:$0xf]
      %v2341 = vld [vmem:[%s5 + $0x68] sm:$0xf]
      %v2342 = vld [vmem:[%s5 + $0x6c] sm:$0xf]
      %v2343 = vld [vmem:[%s5 + $0x70] sm:$0xf]
      %v2344 = vld [vmem:[%s5 + $0x74] sm:$0xf]
      %v2345 = vld [vmem:[%s5 + $0x78] sm:$0xf]
      %v2346 = vld [vmem:[%s5 + $0x7c] sm:$0xf]
      %v2347 = vld [vmem:[%s5 + $0x80] sm:$0xf]
      %v2348 = vld [vmem:[%s5 + $0x84] sm:$0xf]
      %v2349 = vld [vmem:[%s5 + $0x88] sm:$0xf]
      %v2350 = vld [vmem:[%s5 + $0x8c] sm:$0xf]
      %v2351 = vld [vmem:[%s6] sm:$0x1]
      %v2353 = vunpack.c.l.b16 %v2241
      %v2354 = vunpack.c.l.b16 %v2260
      %v2355 = vunpack.c.l.b16 %v2266
      %v2356 = vunpack.c.l.b16 %v2284
      %v2357 = vunpack.c.l.b16 %v2290
      %v2358 = vpack.c.b16 %v2353, %v2353
      %v2359 = vpack.c.b16 %v2354, %v2354
      %v2360 = vpack.c.b16 %v2355, %v2355
      %v2361 = vpack.c.b16 %v2356, %v2356
      %v2362 = vpack.c.b16 %v2357, %v2357
      %v2364 = vshrl.u32 %v2358, 16
      %v2366 = vshll.u32 %v2358, 16
      %v2368 = vrot.slane %v2366, 1
      %v2369 = vor.u32 %v2364, %v2368
      %v2371 = vshrl.u32 %v2359, 16
      %v2373 = vshll.u32 %v2359, 16
      %v2375 = vrot.slane %v2373, 1
      %v2376 = vor.u32 %v2371, %v2375
      %v2378 = vshrl.u32 %v2360, 16
      %v2380 = vshll.u32 %v2360, 16
      %v2382 = vrot.slane %v2380, 1
      %v2383 = vor.u32 %v2378, %v2382
      %v2385 = vshrl.u32 %v2361, 16
      %v2387 = vshll.u32 %v2361, 16
      %v2389 = vrot.slane %v2387, 1
      %v2390 = vor.u32 %v2385, %v2389
      %v2392 = vshrl.u32 %v2362, 16
      %v2394 = vshll.u32 %v2362, 16
      %v2396 = vrot.slane %v2394, 1
      %v2397 = vor.u32 %v2392, %v2396
      %2398 = vrot.lane.b32.xlu0 %v2369, 32
      %v2399 = vpop.permute.xlu0 %2398
      %2400 = vrot.lane.b32.xlu0 %v2376, 32
      %v2401 = vpop.permute.xlu0 %2400
      %2402 = vrot.lane.b32.xlu0 %v2383, 32
      %v2403 = vpop.permute.xlu0 %2402
      %2404 = vrot.lane.b32.xlu0 %v2390, 32
      %v2405 = vpop.permute.xlu0 %2404
      %2406 = vrot.lane.b32.xlu0 %v2397, 32
      %v2407 = vpop.permute.xlu0 %2406
      %v2408 = vrot.slane %v2358, 1
      %v2409 = vrot.slane %v2359, 1
      %v2410 = vrot.slane %v2360, 1
      %v2411 = vrot.slane %v2361, 1
      %v2412 = vrot.slane %v2362, 1
      %2413 = vrot.lane.b32.xlu0 %v2408, 64
      %v2414 = vpop.permute.xlu0 %2413
      %2415 = vrot.lane.b32.xlu0 %v2409, 64
      %v2416 = vpop.permute.xlu0 %2415
      %2417 = vrot.lane.b32.xlu0 %v2410, 64
      %v2418 = vpop.permute.xlu0 %2417
      %2419 = vrot.lane.b32.xlu0 %v2411, 64
      %v2420 = vpop.permute.xlu0 %2419
      %2421 = vrot.lane.b32.xlu0 %v2412, 64
      %v2422 = vpop.permute.xlu0 %2421
      %v2423 = vunpack.c.l.b16 %v2308
      %v2424 = vpack.c.b16 %v2423, %v2423
      %2425 = vrot.lane.b32.xlu0 %v2359, 96
      %v2426 = vpop.permute.xlu0 %2425
      %2427 = vrot.lane.b32.xlu0 %v2360, 96
      %v2428 = vpop.permute.xlu0 %2427
      %2429 = vrot.lane.b32.xlu0 %v2361, 96
      %v2430 = vpop.permute.xlu0 %2429
      %2431 = vrot.lane.b32.xlu0 %v2362, 96
      %v2432 = vpop.permute.xlu0 %2431
      %2433 = vrot.lane.b32.xlu0 %v2424, 96
      %v2434 = vpop.permute.xlu0 %2433
      %v2436 = vshrl.u32 %v2424, 16
      %v2438 = vshll.u32 %v2424, 16
      %v2440 = vrot.slane %v2438, 1
      %v2441 = vor.u32 %v2436, %v2440
      %v2442 = vrot.slane %v2424, 1
      %2443 = vrot.lane.b32.xlu0 %v2409, 32
      %v2444 = vpop.permute.xlu0 %2443
      %2445 = vrot.lane.b32.xlu0 %v2410, 32
      %v2446 = vpop.permute.xlu0 %2445
      %2447 = vrot.lane.b32.xlu0 %v2411, 32
      %v2448 = vpop.permute.xlu0 %2447
      %2449 = vrot.lane.b32.xlu0 %v2412, 32
      %v2450 = vpop.permute.xlu0 %2449
      %2451 = vrot.lane.b32.xlu0 %v2442, 32
      %v2452 = vpop.permute.xlu0 %2451
      %v2453 = vunpack.c.l.b16 %v2314
      %v2454 = vpack.c.b16 %v2453, %v2453
      %2455 = vrot.lane.b32.xlu0 %v2360, 64
      %v2456 = vpop.permute.xlu0 %2455
      %2457 = vrot.lane.b32.xlu0 %v2361, 64
      %v2458 = vpop.permute.xlu0 %2457
      %2459 = vrot.lane.b32.xlu0 %v2362, 64
      %v2460 = vpop.permute.xlu0 %2459
      %2461 = vrot.lane.b32.xlu0 %v2424, 64
      %v2462 = vpop.permute.xlu0 %2461
      %2463 = vrot.lane.b32.xlu0 %v2454, 64
      %v2464 = vpop.permute.xlu0 %2463
      %v2466 = vshrl.u32 %v2454, 16
      %v2468 = vshll.u32 %v2454, 16
      %v2470 = vrot.slane %v2468, 1
      %v2471 = vor.u32 %v2466, %v2470
      %2472 = vrot.lane.b32.xlu0 %v2383, 96
      %v2473 = vpop.permute.xlu0 %2472
      %2474 = vrot.lane.b32.xlu0 %v2390, 96
      %v2475 = vpop.permute.xlu0 %2474
      %2476 = vrot.lane.b32.xlu0 %v2397, 96
      %v2477 = vpop.permute.xlu0 %2476
      %2478 = vrot.lane.b32.xlu0 %v2441, 96
      %v2479 = vpop.permute.xlu0 %2478
      %2480 = vrot.lane.b32.xlu0 %v2471, 96
      %v2481 = vpop.permute.xlu0 %2480
      %v2482 = vrot.slane %v2454, 1
      %v2485 = vsel %vm1244, %v2241, %v2399
      %v2488 = vsel %vm1244, %v2260, %v2401
      %v2491 = vsel %vm1244, %v2266, %v2403
      %v2494 = vsel %vm1244, %v2284, %v2405
      %v2497 = vsel %vm1244, %v2290, %v2407
      %v2499 = vsel %vm1803, %v2485, %v2414
      %v2501 = vsel %vm1803, %v2488, %v2416
      %v2503 = vsel %vm1803, %v2491, %v2418
      %v2505 = vsel %vm1803, %v2494, %v2420
      %v2507 = vsel %vm1803, %v2497, %v2422
      %v2509 = vsel %vm1818, %v2499, %v2426
      %v2512 = vsel %vm1818, %v2501, %v2428
      %v2514 = vsel %vm1818, %v2503, %v2430
      %v2516 = vsel %vm1818, %v2505, %v2432
      %v2518 = vsel %vm1818, %v2507, %v2434
      %v2521 = vsel %vm1244, %v2376, %v2444
      %v2524 = vsel %vm1244, %v2383, %v2446
      %v2527 = vsel %vm1244, %v2390, %v2448
      %v2530 = vsel %vm1244, %v2397, %v2450
      %v2533 = vsel %vm1244, %v2441, %v2452
      %v2535 = vsel %vm1803, %v2521, %v2456
      %v2537 = vsel %vm1803, %v2524, %v2458
      %v2539 = vsel %vm1803, %v2527, %v2460
      %v2541 = vsel %vm1803, %v2530, %v2462
      %v2543 = vsel %vm1803, %v2533, %v2464
      %v2545 = vsel %vm1818, %v2535, %v2473
      %v2548 = vsel %vm1818, %v2537, %v2475
      %v2550 = vsel %vm1818, %v2539, %v2477
      %v2552 = vsel %vm1818, %v2541, %v2479
      %v2554 = vsel %vm1818, %v2543, %v2481
      %v2555 = vshrl.u32 %v2512, 16
      %v2557 = vrot.slane %v2555, 5
      %v2558 = vshll.u32 %v2512, 16
      %v2560 = vrot.slane %v2558, 6
      %v2561 = vor.u32 %v2557, %v2560
      %v2562 = vshrl.u32 %v2548, 16
      %v2564 = vrot.slane %v2562, 5
      %v2565 = vshll.u32 %v2548, 16
      %v2567 = vrot.slane %v2565, 6
      %v2568 = vor.u32 %v2564, %v2567
      %v2570 = vshrl.u32 %v2411, 16
      %v2572 = vrot.slane %v2570, 5
      %v2573 = vshll.u32 %v2411, 16
      %v2575 = vrot.slane %v2573, 6
      %v2576 = vor.u32 %v2572, %v2575
      %v2582 = vrot.slane %v2514, 3
      %v2583 = vrot.slane %v2550, 3
      %v2584 = vrot.slane %v2412, 3
      %v2585 = vshll.u32 %v2516, 16
      %v2587 = vrot.slane %v2585, 1
      %v2588 = vshll.u32 %v2552, 16
      %v2590 = vrot.slane %v2588, 1
      %v2592 = vshll.u32 %v2442, 16
      %v2594 = vrot.slane %v2592, 1
      %v2595 = vshrl.u32 %v2516, 16
      %v2597 = vor.u32 %v2595, %v2587
      %v2598 = vshrl.u32 %v2552, 16
      %v2600 = vor.u32 %v2598, %v2590
      %v2601 = vshrl.u32 %v2442, 16
      %v2603 = vor.u32 %v2601, %v2594
      %v2609 = vrot.slane %v2518, 6
      %v2610 = vrot.slane %v2554, 6
      %v2611 = vrot.slane %v2482, 6
      %v2612 = vsel %vm1999, %v2509, %v2561
      %v2613 = vsel %vm1999, %v2545, %v2568
      %v2614 = vsel %vm1999, %v2410, %v2576
      %v2617 = vsel %vm2019, %v2612, %v2582
      %v2621 = vsel %vm2019, %v2613, %v2583
      %v2625 = vsel %vm2019, %v2614, %v2584
      %v2627 = vsel %vm1332, %v2617, %v2587
      %v2628 = vsel %vm1332, %v2621, %v2590
      %v2629 = vsel %vm1332, %v2625, %v2594
      %v2632 = vsel %vm1316, %v2597, %v2609
      %v2636 = vsel %vm1316, %v2600, %v2610
      %v2640 = vsel %vm1316, %v2603, %v2611
      %v2642 = vperm.slane %v2351, 0
      %v2680 = vunpack.c.l.b16 %v2315
      %v2681 = vunpack.c.l.b16 %v2316
      %v2682 = vunpack.c.l.b16 %v2317
      %v2683 = vunpack.c.l.b16 %v2318
      %v2684 = vunpack.c.l.b16 %v2319
      %v2685 = vunpack.c.l.b16 %v2320
      %v2686 = vunpack.c.l.b16 %v2321
      %v2687 = vunpack.c.l.b16 %v2322
      %v2688 = vunpack.c.l.b16 %v2323
      %v2689 = vunpack.c.l.b16 %v2324
      %v2690 = vunpack.c.l.b16 %v2325
      %v2691 = vunpack.c.l.b16 %v2326
      %v2692 = vunpack.c.l.b16 %v2327
      %v2693 = vunpack.c.l.b16 %v2328
      %v2694 = vunpack.c.l.b16 %v2329
      %v2695 = vunpack.c.l.b16 %v2330
      %v2696 = vunpack.c.l.b16 %v2331
      %v2697 = vunpack.c.l.b16 %v2332
      %v2698 = vunpack.c.l.b16 %v2333
      %v2699 = vunpack.c.l.b16 %v2334
      %v2700 = vunpack.c.l.b16 %v2335
      %v2701 = vunpack.c.l.b16 %v2336
      %v2702 = vunpack.c.l.b16 %v2337
      %v2703 = vunpack.c.l.b16 %v2338
      %v2704 = vunpack.c.l.b16 %v2339
      %v2705 = vunpack.c.l.b16 %v2340
      %v2706 = vunpack.c.l.b16 %v2341
      %v2707 = vunpack.c.l.b16 %v2342
      %v2708 = vunpack.c.l.b16 %v2343
      %v2709 = vunpack.c.l.b16 %v2344
      %v2710 = vunpack.c.l.b16 %v2345
      %v2711 = vunpack.c.l.b16 %v2346
      %v2712 = vunpack.c.l.b16 %v2347
      %v2713 = vunpack.c.l.b16 %v2348
      %v2714 = vunpack.c.l.b16 %v2349
      %v2715 = vunpack.c.l.b16 %v2350
      %v2716 = vpack.c.b16 %v2681, %v2680
      %v2717 = vpack.c.b16 %v2683, %v2682
      %v2718 = vpack.c.b16 %v2685, %v2684
      %v2719 = vpack.c.b16 %v2687, %v2686
      %v2720 = vpack.c.b16 %v2689, %v2688
      %v2721 = vpack.c.b16 %v2691, %v2690
      %v2722 = vpack.c.b16 %v2693, %v2692
      %v2723 = vpack.c.b16 %v2695, %v2694
      %v2724 = vpack.c.b16 %v2697, %v2696
      %v2725 = vpack.c.b16 %v2699, %v2698
      %v2726 = vpack.c.b16 %v2701, %v2700
      %v2727 = vpack.c.b16 %v2703, %v2702
      %v2728 = vpack.c.b16 %v2705, %v2704
      %v2729 = vpack.c.b16 %v2707, %v2706
      %v2730 = vpack.c.b16 %v2709, %v2708
      %v2731 = vpack.c.b16 %v2711, %v2710
      %v2732 = vpack.c.b16 %v2713, %v2712
      %v2733 = vpack.c.b16 %v2715, %v2714
      %v2753 = vsel %vm1244, %v2629, 0
      %v2755 = vsel %vm1244, %v2640, 0
      %2757 = vmatpush.bf16.msra.mxu0 %v2723
      %2758 = vmatpush.bf16.msra.mxu0 %v2722
      %2759 = vmatpush.bf16.msra.mxu0 %v2721
      %2760 = vmatpush.bf16.msra.mxu0 %v2720
      %2761 = vmatpush.bf16.msra.mxu0 %v2719
      %2762 = vmatpush.bf16.msra.mxu0 %v2718
      %2763 = vmatpush.bf16.msra.mxu0 %v2717
      %2764 = vmatpush.bf16.msra.mxu0 %v2716
      %2765 = vmatmul.bf16.gmra.mxu0 %v2627
      %v2766 = vpop.f32.mrf.mxu0
      %v2767 = vadd.f32 %v2642, %v2766
      %v2768 = vpop.f32.mrf.mxu0
      %v2769 = vadd.f32 %v2642, %v2768
      %2770 = vmatmul.bf16.gmra.mxu0 %v2632
      %v2771 = vpop.f32.mrf.mxu0
      %v2772 = vadd.f32 %v2642, %v2771
      %v2773 = vpop.f32.mrf.mxu0
      %v2774 = vadd.f32 %v2642, %v2773
      %2775 = vdwg.mxu0
      %2776 = vmatpush.bf16.msra.mxu0 %v2731
      %2777 = vmatpush.bf16.msra.mxu0 %v2730
      %2778 = vmatpush.bf16.msra.mxu0 %v2729
      %2779 = vmatpush.bf16.msra.mxu0 %v2728
      %2780 = vmatpush.bf16.msra.mxu0 %v2727
      %2781 = vmatpush.bf16.msra.mxu0 %v2726
      %2782 = vmatpush.bf16.msra.mxu0 %v2725
      %2783 = vmatpush.bf16.msra.mxu0 %v2724
      %2784 = vmatmul.bf16.gmra.mxu0 %v2628
      %v2785 = vpop.f32.mrf.mxu0
      %v2786 = vadd.f32 %v2767, %v2785
      %v2787 = vpop.f32.mrf.mxu0
      %v2788 = vadd.f32 %v2769, %v2787
      %2789 = vmatmul.bf16.gmra.mxu0 %v2636
      %v2790 = vpop.f32.mrf.mxu0
      %v2791 = vadd.f32 %v2772, %v2790
      %v2792 = vpop.f32.mrf.mxu0
      %v2793 = vadd.f32 %v2774, %v2792
      %2794 = vdwg.mxu0
      %2795 = vmatpush.bf16.msra.mxu0 0
      %2796 = vmatpush.bf16.msra.mxu0 0
      %2797 = vmatpush.bf16.msra.mxu0 0
      %2798 = vmatpush.bf16.msra.mxu0 0
      %2799 = vmatpush.bf16.msra.mxu0 0
      %2800 = vmatpush.bf16.msra.mxu0 0
      %2801 = vmatpush.bf16.msra.mxu0 %v2733
      %2802 = vmatpush.bf16.msra.mxu0 %v2732
      %2803 = vmatmul.bf16.gmra.mxu0 %v2753
      %v2804 = vpop.f32.mrf.mxu0
      %v2805 = vadd.f32 %v2786, %v2804
      %v2806 = vpop.f32.mrf.mxu0
      %v2807 = vadd.f32 %v2788, %v2806
      %2808 = vmatmul.bf16.gmra.mxu0 %v2755
      %v2809 = vpop.f32.mrf.mxu0
      %v2810 = vadd.f32 %v2791, %v2809
      %v2811 = vpop.f32.mrf.mxu0
      %v2812 = vadd.f32 %v2793, %v2811
      %2813 = vdwg.mxu0
      %v2814 = vmax.f32 %v2805, 0.0
      %v2815 = vmax.f32 %v2807, 0.0
      %v2816 = vmax.f32 %v2810, 0.0
      %v2817 = vmax.f32 %v2812, 0.0
      %v2818 = vpack.c.bf16 %v2814, %v2814
      %v2819 = vpack.c.bf16 %v2815, %v2815
      %v2820 = vpack.c.bf16 %v2816, %v2816
      %v2821 = vpack.c.bf16 %v2817, %v2817
      %v2823 = vshrl.u32 %v2818, 16
      %v2825 = vrot.slane %v2823, 6
      %v2826 = vshll.u32 %v2818, 16
      %v2828 = vrot.slane %v2826, 7
      %v2829 = vor.u32 %v2825, %v2828
      %v2830 = vrot.slane %v2829, 4
      %v2832 = vshrl.u32 %v2819, 16
      %v2834 = vrot.slane %v2832, 6
      %v2835 = vshll.u32 %v2819, 16
      %v2837 = vrot.slane %v2835, 7
      %v2838 = vor.u32 %v2834, %v2837
      %v2839 = vsel %vm1501, %v2830, %v2838
      %v2841 = vrot.slane %v2819, 5
      %v2842 = vrot.slane %v2841, 4
      %v2843 = vrot.slane %v2832, 7
      %v2844 = vrot.slane %v2843, 4
      %v2846 = vshrl.u32 %v2820, 16
      %v2848 = vrot.slane %v2846, 7
      %v2849 = vshll.u32 %v2820, 16
      %v2851 = vor.u32 %v2848, %v2849
      %v2852 = vsel %vm1533, %v2844, %v2851
      %v2855 = vrot.slane %v2820, 6
      %v2856 = vrot.slane %v2855, 4
      %v2857 = vrot.slane %v2821, 6
      %v2858 = vsel %vm1493, %v2856, %v2857
      %v2859 = vld [vmem:[%s7] sm:$0xf]
      %v2860 = vld [vmem:[%s7 + $0x4] sm:$0xf]
      %v2861 = vld [vmem:[%s7 + $0x8] sm:$0xf]
      %v2862 = vld [vmem:[%s7 + $0xc] sm:$0xf]
      %v2863 = vld [vmem:[%s7 + $0x10] sm:$0xf]
      %v2864 = vld [vmem:[%s7 + $0x14] sm:$0xf]
      %v2865 = vld [vmem:[%s7 + $0x18] sm:$0xf]
      %v2866 = vld [vmem:[%s7 + $0x1c] sm:$0xf]
      %v2867 = vld [vmem:[%s7 + $0x20] sm:$0xf]
      %v2868 = vld [vmem:[%s7 + $0x24] sm:$0xf]
      %v2869 = vld [vmem:[%s7 + $0x28] sm:$0xf]
      %v2870 = vld [vmem:[%s7 + $0x2c] sm:$0xf]
      %v2871 = vld [vmem:[%s7 + $0x30] sm:$0xf]
      %v2872 = vld [vmem:[%s7 + $0x34] sm:$0xf]
      %v2873 = vld [vmem:[%s7 + $0x38] sm:$0xf]
      %v2874 = vld [vmem:[%s7 + $0x3c] sm:$0xf]
      %v2875 = vld [vmem:[%s7 + $0x40] sm:$0xf]
      %v2876 = vld [vmem:[%s7 + $0x44] sm:$0xf]
      %v2877 = vld [vmem:[%s7 + $0x48] sm:$0xf]
      %v2878 = vld [vmem:[%s7 + $0x4c] sm:$0xf]
      %v2879 = vld [vmem:[%s7 + $0x50] sm:$0xf]
      %v2880 = vld [vmem:[%s7 + $0x54] sm:$0xf]
      %v2881 = vld [vmem:[%s7 + $0x58] sm:$0xf]
      %v2882 = vld [vmem:[%s7 + $0x5c] sm:$0xf]
      %v2883 = vld [vmem:[%s7 + $0x60] sm:$0xf]
      %v2884 = vld [vmem:[%s7 + $0x64] sm:$0xf]
      %v2885 = vld [vmem:[%s7 + $0x68] sm:$0xf]
      %v2886 = vld [vmem:[%s7 + $0x6c] sm:$0xf]
      %v2887 = vld [vmem:[%s7 + $0x70] sm:$0xf]
      %v2888 = vld [vmem:[%s7 + $0x74] sm:$0xf]
      %v2889 = vld [vmem:[%s7 + $0x78] sm:$0xf]
      %v2890 = vld [vmem:[%s7 + $0x7c] sm:$0xf]
      %v2891 = vld [vmem:[%s7 + $0x80] sm:$0xf]
      %v2892 = vld [vmem:[%s7 + $0x84] sm:$0xf]
      %v2893 = vld [vmem:[%s7 + $0x88] sm:$0xf]
      %v2894 = vld [vmem:[%s7 + $0x8c] sm:$0xf]
      %v2895 = vld [vmem:[%s8] sm:$0x1]
      %v2897 = vunpack.c.l.b16 %v2818
      %v2898 = vunpack.c.l.b16 %v2839
      %v2899 = vunpack.c.l.b16 %v2842
      %v2900 = vpack.c.b16 %v2897, %v2897
      %v2901 = vpack.c.b16 %v2898, %v2898
      %v2902 = vpack.c.b16 %v2899, %v2899
      %v2904 = vshrl.u32 %v2900, 16
      %v2906 = vshll.u32 %v2900, 16
      %v2908 = vrot.slane %v2906, 1
      %v2909 = vor.u32 %v2904, %v2908
      %v2911 = vshrl.u32 %v2901, 16
      %v2913 = vshll.u32 %v2901, 16
      %v2915 = vrot.slane %v2913, 1
      %v2916 = vor.u32 %v2911, %v2915
      %v2918 = vshrl.u32 %v2902, 16
      %v2920 = vshll.u32 %v2902, 16
      %v2922 = vrot.slane %v2920, 1
      %v2923 = vor.u32 %v2918, %v2922
      %2924 = vrot.lane.b32.xlu0 %v2909, 32
      %v2925 = vpop.permute.xlu0 %2924
      %2926 = vrot.lane.b32.xlu0 %v2916, 32
      %v2927 = vpop.permute.xlu0 %2926
      %2928 = vrot.lane.b32.xlu0 %v2923, 32
      %v2929 = vpop.permute.xlu0 %2928
      %v2930 = vrot.slane %v2900, 1
      %v2931 = vrot.slane %v2901, 1
      %v2932 = vrot.slane %v2902, 1
      %2933 = vrot.lane.b32.xlu0 %v2930, 64
      %v2934 = vpop.permute.xlu0 %2933
      %2935 = vrot.lane.b32.xlu0 %v2931, 64
      %v2936 = vpop.permute.xlu0 %2935
      %2937 = vrot.lane.b32.xlu0 %v2932, 64
      %v2938 = vpop.permute.xlu0 %2937
      %v2939 = vunpack.c.l.b16 %v2852
      %v2940 = vpack.c.b16 %v2939, %v2939
      %2941 = vrot.lane.b32.xlu0 %v2901, 96
      %v2942 = vpop.permute.xlu0 %2941
      %2943 = vrot.lane.b32.xlu0 %v2902, 96
      %v2944 = vpop.permute.xlu0 %2943
      %2945 = vrot.lane.b32.xlu0 %v2940, 96
      %v2946 = vpop.permute.xlu0 %2945
      %v2948 = vshrl.u32 %v2940, 16
      %v2950 = vshll.u32 %v2940, 16
      %v2952 = vrot.slane %v2950, 1
      %v2953 = vor.u32 %v2948, %v2952
      %v2954 = vrot.slane %v2940, 1
      %2955 = vrot.lane.b32.xlu0 %v2931, 32
      %v2956 = vpop.permute.xlu0 %2955
      %2957 = vrot.lane.b32.xlu0 %v2932, 32
      %v2958 = vpop.permute.xlu0 %2957
      %2959 = vrot.lane.b32.xlu0 %v2954, 32
      %v2960 = vpop.permute.xlu0 %2959
      %v2961 = vunpack.c.l.b16 %v2858
      %v2962 = vpack.c.b16 %v2961, %v2961
      %2963 = vrot.lane.b32.xlu0 %v2902, 64
      %v2964 = vpop.permute.xlu0 %2963
      %2965 = vrot.lane.b32.xlu0 %v2940, 64
      %v2966 = vpop.permute.xlu0 %2965
      %2967 = vrot.lane.b32.xlu0 %v2962, 64
      %v2968 = vpop.permute.xlu0 %2967
      %v2970 = vshrl.u32 %v2962, 16
      %v2972 = vshll.u32 %v2962, 16
      %v2974 = vrot.slane %v2972, 1
      %v2975 = vor.u32 %v2970, %v2974
      %2976 = vrot.lane.b32.xlu0 %v2923, 96
      %v2977 = vpop.permute.xlu0 %2976
      %2978 = vrot.lane.b32.xlu0 %v2953, 96
      %v2979 = vpop.permute.xlu0 %2978
      %2980 = vrot.lane.b32.xlu0 %v2975, 96
      %v2981 = vpop.permute.xlu0 %2980
      %v2982 = vrot.slane %v2962, 1
      %v2985 = vsel %vm1244, %v2818, %v2925
      %v2988 = vsel %vm1244, %v2839, %v2927
      %v2991 = vsel %vm1244, %v2842, %v2929
      %v2993 = vsel %vm1803, %v2985, %v2934
      %v2995 = vsel %vm1803, %v2988, %v2936
      %v2997 = vsel %vm1803, %v2991, %v2938
      %v2999 = vsel %vm1818, %v2993, %v2942
      %v3002 = vsel %vm1818, %v2995, %v2944
      %v3004 = vsel %vm1818, %v2997, %v2946
      %v3007 = vsel %vm1244, %v2916, %v2956
      %v3010 = vsel %vm1244, %v2923, %v2958
      %v3013 = vsel %vm1244, %v2953, %v2960
      %v3015 = vsel %vm1803, %v3007, %v2964
      %v3017 = vsel %vm1803, %v3010, %v2966
      %v3019 = vsel %vm1803, %v3013, %v2968
      %v3021 = vsel %vm1818, %v3015, %v2977
      %v3024 = vsel %vm1818, %v3017, %v2979
      %v3026 = vsel %vm1818, %v3019, %v2981
      %v3027 = vshrl.u32 %v3002, 16
      %v3029 = vrot.slane %v3027, 6
      %v3030 = vshll.u32 %v3002, 16
      %v3032 = vrot.slane %v3030, 7
      %v3033 = vor.u32 %v3029, %v3032
      %v3034 = vshrl.u32 %v3024, 16
      %v3036 = vrot.slane %v3034, 6
      %v3037 = vshll.u32 %v3024, 16
      %v3039 = vrot.slane %v3037, 7
      %v3040 = vor.u32 %v3036, %v3039
      %v3042 = vshrl.u32 %v2954, 16
      %v3044 = vrot.slane %v3042, 6
      %v3045 = vshll.u32 %v2954, 16
      %v3047 = vrot.slane %v3045, 7
      %v3048 = vor.u32 %v3044, %v3047
      %v3054 = vrot.slane %v3004, 5
      %v3055 = vrot.slane %v3026, 5
      %v3056 = vrot.slane %v2982, 5
      %v3057 = vsel %vm2015, %v2999, %v3033
      %v3058 = vsel %vm2015, %v3021, %v3040
      %v3059 = vsel %vm2015, %v2932, %v3048
      %v3062 = vsel %vm1325, %v3057, %v3054
      %v3066 = vsel %vm1325, %v3058, %v3055
      %v3070 = vsel %vm1325, %v3059, %v3056
      %v3072 = vperm.slane %v2895, 0
      %v3110 = vunpack.c.l.b16 %v2859
      %v3111 = vunpack.c.l.b16 %v2860
      %v3112 = vunpack.c.l.b16 %v2861
      %v3113 = vunpack.c.l.b16 %v2862
      %v3114 = vunpack.c.l.b16 %v2863
      %v3115 = vunpack.c.l.b16 %v2864
      %v3116 = vunpack.c.l.b16 %v2865
      %v3117 = vunpack.c.l.b16 %v2866
      %v3118 = vunpack.c.l.b16 %v2867
      %v3119 = vunpack.c.l.b16 %v2868
      %v3120 = vunpack.c.l.b16 %v2869
      %v3121 = vunpack.c.l.b16 %v2870
      %v3122 = vunpack.c.l.b16 %v2871
      %v3123 = vunpack.c.l.b16 %v2872
      %v3124 = vunpack.c.l.b16 %v2873
      %v3125 = vunpack.c.l.b16 %v2874
      %v3126 = vunpack.c.l.b16 %v2875
      %v3127 = vunpack.c.l.b16 %v2876
      %v3128 = vunpack.c.l.b16 %v2877
      %v3129 = vunpack.c.l.b16 %v2878
      %v3130 = vunpack.c.l.b16 %v2879
      %v3131 = vunpack.c.l.b16 %v2880
      %v3132 = vunpack.c.l.b16 %v2881
      %v3133 = vunpack.c.l.b16 %v2882
      %v3134 = vunpack.c.l.b16 %v2883
      %v3135 = vunpack.c.l.b16 %v2884
      %v3136 = vunpack.c.l.b16 %v2885
      %v3137 = vunpack.c.l.b16 %v2886
      %v3138 = vunpack.c.l.b16 %v2887
      %v3139 = vunpack.c.l.b16 %v2888
      %v3140 = vunpack.c.l.b16 %v2889
      %v3141 = vunpack.c.l.b16 %v2890
      %v3142 = vunpack.c.l.b16 %v2891
      %v3143 = vunpack.c.l.b16 %v2892
      %v3144 = vunpack.c.l.b16 %v2893
      %v3145 = vunpack.c.l.b16 %v2894
      %v3146 = vpack.c.b16 %v3111, %v3110
      %v3147 = vpack.c.b16 %v3113, %v3112
      %v3148 = vpack.c.b16 %v3115, %v3114
      %v3149 = vpack.c.b16 %v3117, %v3116
      %v3150 = vpack.c.b16 %v3119, %v3118
      %v3151 = vpack.c.b16 %v3121, %v3120
      %v3152 = vpack.c.b16 %v3123, %v3122
      %v3153 = vpack.c.b16 %v3125, %v3124
      %v3154 = vpack.c.b16 %v3127, %v3126
      %v3155 = vpack.c.b16 %v3129, %v3128
      %v3156 = vpack.c.b16 %v3131, %v3130
      %v3157 = vpack.c.b16 %v3133, %v3132
      %v3158 = vpack.c.b16 %v3135, %v3134
      %v3159 = vpack.c.b16 %v3137, %v3136
      %v3160 = vpack.c.b16 %v3139, %v3138
      %v3161 = vpack.c.b16 %v3141, %v3140
      %v3162 = vpack.c.b16 %v3143, %v3142
      %v3163 = vpack.c.b16 %v3145, %v3144
      %v3182 = vsel %vm1244, %v3070, 0
      %3184 = vmatpush.bf16.msra.mxu0 %v3153
      %3185 = vmatpush.bf16.msra.mxu0 %v3152
      %3186 = vmatpush.bf16.msra.mxu0 %v3151
      %3187 = vmatpush.bf16.msra.mxu0 %v3150
      %3188 = vmatpush.bf16.msra.mxu0 %v3149
      %3189 = vmatpush.bf16.msra.mxu0 %v3148
      %3190 = vmatpush.bf16.msra.mxu0 %v3147
      %3191 = vmatpush.bf16.msra.mxu0 %v3146
      %3192 = vmatmul.bf16.gmra.mxu0 %v3062
      %v3193 = vpop.f32.mrf.mxu0
      %v3194 = vadd.f32 %v3072, %v3193
      %v3195 = vpop.f32.mrf.mxu0
      %v3196 = vadd.f32 %v3072, %v3195
      %3197 = vdwg.mxu0
      %3198 = vmatpush.bf16.msra.mxu0 %v3161
      %3199 = vmatpush.bf16.msra.mxu0 %v3160
      %3200 = vmatpush.bf16.msra.mxu0 %v3159
      %3201 = vmatpush.bf16.msra.mxu0 %v3158
      %3202 = vmatpush.bf16.msra.mxu0 %v3157
      %3203 = vmatpush.bf16.msra.mxu0 %v3156
      %3204 = vmatpush.bf16.msra.mxu0 %v3155
      %3205 = vmatpush.bf16.msra.mxu0 %v3154
      %3206 = vmatmul.bf16.gmra.mxu0 %v3066
      %v3207 = vpop.f32.mrf.mxu0
      %v3208 = vadd.f32 %v3194, %v3207
      %v3209 = vpop.f32.mrf.mxu0
      %v3210 = vadd.f32 %v3196, %v3209
      %3211 = vdwg.mxu0
      %3212 = vmatpush.bf16.msra.mxu0 0
      %3213 = vmatpush.bf16.msra.mxu0 0
      %3214 = vmatpush.bf16.msra.mxu0 0
      %3215 = vmatpush.bf16.msra.mxu0 0
      %3216 = vmatpush.bf16.msra.mxu0 0
      %3217 = vmatpush.bf16.msra.mxu0 0
      %3218 = vmatpush.bf16.msra.mxu0 %v3163
      %3219 = vmatpush.bf16.msra.mxu0 %v3162
      %3220 = vmatmul.bf16.gmra.mxu0 %v3182
      %v3221 = vpop.f32.mrf.mxu0
      %v3222 = vadd.f32 %v3208, %v3221
      %v3223 = vpop.f32.mrf.mxu0
      %v3224 = vadd.f32 %v3210, %v3223
      %3225 = vdwg.mxu0
      %v3226 = vmax.f32 %v3222, 0.0
      %v3227 = vmax.f32 %v3224, 0.0
      %3228 = vxpose.xlu0.b32.start [1/16] %v3226, 128
      %3229 = vxpose.xlu0.b32.cont [2/16] %v3227, 128
      %3230 = vxpose.xlu0.b32.cont [3/16] 0.0, 128
      %3231 = vxpose.xlu0.b32.cont [4/16] 0.0, 128
      %3232 = vxpose.xlu0.b32.cont [5/16] 0.0, 128
      %3233 = vxpose.xlu0.b32.cont [6/16] 0.0, 128
      %3234 = vxpose.xlu0.b32.cont [7/16] 0.0, 128
      %3235 = vxpose.xlu0.b32.cont [8/16] 0.0, 128
      %3236 = vxpose.xlu0.b32.cont [9/16] 0.0, 128
      %3237 = vxpose.xlu0.b32.cont [10/16] 0.0, 128
      %3238 = vxpose.xlu0.b32.cont [11/16] 0.0, 128
      %3239 = vxpose.xlu0.b32.cont [12/16] 0.0, 128
      %3240 = vxpose.xlu0.b32.cont [13/16] 0.0, 128
      %3241 = vxpose.xlu0.b32.cont [14/16] 0.0, 128
      %3242 = vxpose.xlu0.b32.cont [15/16] 0.0, 128
      %3243 = vxpose.xlu0.b32.end [16/16] 0.0, 128
      %v3244 = vpop.trf.xlu0
      %v3245 = vpop.trf.xlu0
      %v3246 = vpop.trf.xlu0
      %v3247 = vpop.trf.xlu0
      %v3248 = vpop.trf.xlu0
      %v3249 = vpop.trf.xlu0
      %v3250 = vpop.trf.xlu0
      %v3251 = vpop.trf.xlu0
      %v3252 = vpop.trf.xlu0
      %v3253 = vpop.trf.xlu0
      %v3254 = vpop.trf.xlu0
      %v3255 = vpop.trf.xlu0
      %v3256 = vpop.trf.xlu0
      %v3257 = vpop.trf.xlu0
      %v3258 = vpop.trf.xlu0
      %v3259 = vpop.trf.xlu0
      %vm3260 = vcmask 72704
      %3261 = vst.msk [vmem:[%s332] sm:$0xff] %vm3260, %v3244
      %3262 = vst.msk [vmem:[%s332 + $0x8] sm:$0xff] %vm3260, %v3245
      %3263 = vst.msk [vmem:[%s332 + $0x10] sm:$0xff] %vm3260, %v3246
      %3264 = vst.msk [vmem:[%s332 + $0x18] sm:$0xff] %vm3260, %v3247
      %p3265 = scmp.lt.s32.totalorder %s20, 1
      %s3266 = scalar_select %p3265, %s20, 1
      %s3267 = smul.addr %s3266, 4
      %s3268 = smul.addr %s3267, 8
      %s3269 = scalar_lea.vmem %s9, %s3268
      // Predicated region
      $region57: #{tpu_custom_call.1} parent=55 // pred_check
        %p3270 = pneg %p232
      $region58: #{tpu_custom_call.1} parent=55 // pred_check_branch
        %3272 = sbr.rel (%p3270) target = $region60
      $region59: #{tpu_custom_call.1} parent=55 // pred_region
        _
      $region60: #{tpu_custom_call.1} parent=55 // pred_fallthru
        _
    $region56: #{tpu_custom_call.1} parent=5 // pred_fallthru
      _
    %p3273 = scmp.le.s32.totalorder 2, %s15
    // Predicated region
    $region61: #{tpu_custom_call.1} parent=5 // pred_check
      %p3274 = pneg %p3273
    $region62: #{tpu_custom_call.1} parent=5 // pred_check_branch
      %3276 = sbr.rel (%p3274) target = $region64
    $region63: #{tpu_custom_call.1} parent=5 // pred_region
      %s3277 = ssub.s32 %s15, 2
      // Predicated region
      $region65: #{tpu_custom_call.1} parent=63 // pred_check
        %p3278 = pneg %p238
      $region66: #{tpu_custom_call.1} parent=63 // pred_check_branch
        %3280 = sbr.rel (%p3278) target = $region68
      $region67: #{tpu_custom_call.1} parent=63 // pred_region
        %p3281 = scmp.lt.s32.totalorder %s21, 1
        %s3282 = scalar_select %p3281, %s21, 1
        %s3283 = smul.addr %s3282, 4
        %s3284 = smul.addr %s3283, 8
        %s3285 = scalar_lea.vmem %s9, %s3284
      $region68: #{tpu_custom_call.1} parent=63 // pred_fallthru
        _
    $region64: #{tpu_custom_call.1} parent=5 // pred_fallthru
      _
  $region6: #{tpu_custom_call.1} parent=0 // loop_footer
    %s19 = sadd.s32 1, %s15
  $region7: #{tpu_custom_call.1} parent=0 // loop_footer_branch
    %14 = sbr.rel target = $region3
  $region8: #{tpu_custom_call.1} parent=0 // loop_exit
    _

</llo_original>
